<compile_context>
chip_gen: v6e
topology: v6e:2x2x1
jax: 0.10.0
libtpu: 0.0.40
codegen_flags: <defaults>
</compile_context>

<pallas_src>
import math
import numpy as np
import jax
import jax.numpy as jnp
from jax.experimental import pallas as pl
from jax.experimental.pallas import tpu as pltpu

# ----------------------------- configuration --------------------------------
B = 2                      # batch
L = 8                      # max_list_len
EMBED_DIM = 8              # args.embed_dim
ATTR_FNUM = 3              # dataset.attr_ft_num
ITEM_FNUM = 1 + ATTR_FNUM
D = ITEM_FNUM * EMBED_DIM  # itm_emb_dim = 32
N_HEAD = 2
HEAD_DIM = D // N_HEAD     # 16
MLP_H1, MLP_H2 = 64, 32    # args.final_mlp_arch
ITEM_NUM = 50
ATTR_NUM = 30

# row indices into the packed `misc` (bias / small-weight) array
_BQ, _BK, _BV, _BO, _B1, _B2, _WF, _BF = range(8)
MISC_W = MLP_H1            # 64 lanes: widest packed row (b1)


# ------------------------------ Pallas kernel --------------------------------
def mir_kernel(x_ref, wattn_ref, wmlp_ref, misc_ref, out_ref):
    """x_ref (B,L,D) -> out_ref (B,L) = sigmoid(MLP(cat[MHA(x), x]))."""
    x3 = x_ref[...]                              # (B, L, D)
    x = x3.reshape(B * L, D)                     # leading-dim collapse (layout no-op)

    scale = 1.0 / math.sqrt(HEAD_DIM)
    attn = None
    for h in range(N_HEAD):                      # static unroll, N_HEAD = 2
        c = h * HEAD_DIM
        # per-head projections directly from statically sliced weight/bias refs
        qh = (jnp.dot(x, wattn_ref[:, c:c + HEAD_DIM],
                      preferred_element_type=jnp.float32)
              + misc_ref[_BQ:_BQ + 1, c:c + HEAD_DIM])
        kh = (jnp.dot(x, wattn_ref[:, D + c:D + c + HEAD_DIM],
                      preferred_element_type=jnp.float32)
              + misc_ref[_BK:_BK + 1, c:c + HEAD_DIM])
        vh = (jnp.dot(x, wattn_ref[:, 2 * D + c:2 * D + c + HEAD_DIM],
                      preferred_element_type=jnp.float32)
              + misc_ref[_BV:_BV + 1, c:c + HEAD_DIM])
        qh = qh.reshape(B, L, HEAD_DIM)
        kh = kh.reshape(B, L, HEAD_DIM)
        vh = vh.reshape(B, L, HEAD_DIM)

        s = jnp.einsum("bld,bmd->blm", qh, kh,
                       preferred_element_type=jnp.float32) * scale          # (B, L, L)
        s = s - jnp.max(s, axis=-1, keepdims=True)
        p = jnp.exp(s)
        p = p * pl.reciprocal(jnp.sum(p, axis=-1, keepdims=True), approx=True)
        oh = jnp.einsum("blm,bmd->bld", p, vh,
                        preferred_element_type=jnp.float32)                 # (B, L, dh)

        # weight-side head merge: accumulate oh @ Wo[rows of this head]
        contrib = jnp.dot(oh.reshape(B * L, HEAD_DIM),
                          wattn_ref[c:c + HEAD_DIM, 3 * D:4 * D],
                          preferred_element_type=jnp.float32)               # (BL, D)
        attn = contrib if attn is None else attn + contrib
    attn = attn + misc_ref[_BO:_BO + 1, :D]

    # MLP over cat([attn, x]) realized as two dots (no lane-axis concat)
    h1 = jnp.maximum(
        jnp.dot(attn, wmlp_ref[:D, :MLP_H1], preferred_element_type=jnp.float32)
        + jnp.dot(x, wmlp_ref[D:2 * D, :MLP_H1], preferred_element_type=jnp.float32)
        + misc_ref[_B1:_B1 + 1, :MLP_H1], 0.0)                              # (BL, H1)
    h2 = jnp.maximum(
        jnp.dot(h1, wmlp_ref[:MLP_H1, MLP_H1:MLP_H1 + MLP_H2],
                preferred_element_type=jnp.float32)
        + misc_ref[_B2:_B2 + 1, :MLP_H2], 0.0)                              # (BL, H2)

    # fc_out as a lane reduction in (B, L, H2) -> lane-dense (B, L) store
    logit = (jnp.sum(h2.reshape(B, L, MLP_H2) * misc_ref[_WF:_WF + 1, :MLP_H2],
                     axis=-1)
             + misc_ref[_BF:_BF + 1, 0:1])                                  # (B, L)
    out_ref[...] = jax.nn.sigmoid(logit)


# ----------------------------- wrapper / packing ------------------------------
def pack_params(p):
    """Pack 14 small parameter tensors into 3 DMA-friendly arrays."""
    w_attn = jnp.concatenate([p["wq"], p["wk"], p["wv"], p["wo"]], axis=1)  # (D, 4D)

    r1, r2 = p["w1"].shape[0], p["w2"].shape[0]
    rows = max(r1, r2)
    w1 = jnp.pad(p["w1"], ((0, rows - r1), (0, 0)))
    w2 = jnp.pad(p["w2"], ((0, rows - r2), (0, 0)))
    w_mlp = jnp.concatenate([w1, w2], axis=1)                               # (2D, H1+H2)

    def row(v):
        v = jnp.asarray(v, jnp.float32).reshape(1, -1)
        return jnp.pad(v, ((0, 0), (0, MISC_W - v.shape[1])))

    misc = jnp.concatenate(
        [row(p["bq"]), row(p["bk"]), row(p["bv"]), row(p["bo"]),
         row(p["b1"]), row(p["b2"]), row(p["wf"]), row(p["bf"])], axis=0)   # (8, 64)
    return w_attn, w_mlp, misc


def mir_forward(item_emb, params):
    """item_emb: (B, L, D) float32 -> scores (B, L) float32."""
    w_attn, w_mlp, misc = pack_params(params)
    return pl.pallas_call(
        mir_kernel,
        out_shape=jax.ShapeDtypeStruct((B, L), jnp.float32),
        grid=(1,),                               # single grid step: whole batch at once
        in_specs=[
            pl.BlockSpec((B, L, D), lambda i: (0, 0, 0)),
            pl.BlockSpec(w_attn.shape, lambda i: (0, 0)),
            pl.BlockSpec(w_mlp.shape, lambda i: (0, 0)),
            pl.BlockSpec(misc.shape, lambda i: (0, 0)),
        ],
        out_specs=pl.BlockSpec((B, L), lambda i: (0, 0)),
        compiler_params=pltpu.CompilerParams(dimension_semantics=("arbitrary",)),
    )(item_emb, w_attn, w_mlp, misc)


# ------------------------------ pure-JAX reference ----------------------------
def reference_forward(item_emb, p):
    x = item_emb                                               # (B, L, D)
    q = x @ p["wq"] + p["bq"]
    k = x @ p["wk"] + p["bk"]
    v = x @ p["wv"] + p["bv"]
    scale = 1.0 / math.sqrt(HEAD_DIM)
    outs = []
    for h in range(N_HEAD):
        lo, hi = h * HEAD_DIM, (h + 1) * HEAD_DIM
        s = jnp.einsum("bld,bmd->blm", q[..., lo:hi], k[..., lo:hi]) * scale
        a = jax.nn.softmax(s, axis=-1)
        outs.append(jnp.einsum("blm,bmd->bld", a, v[..., lo:hi]))
    attn = jnp.concatenate(outs, axis=-1) @ p["wo"] + p["bo"]
    cat = jnp.concatenate([attn, x], axis=-1)
    h1 = jax.nn.relu(cat @ p["w1"] + p["b1"])
    h2 = jax.nn.relu(h1 @ p["w2"] + p["b2"])
    return jax.nn.sigmoid(h2 @ p["wf"] + p["bf"]).reshape(B, L)


# ------------------------------------ main ------------------------------------
if __name__ == "__main__":
    key = jax.random.PRNGKey(0)
    ks = jax.random.split(key, 20)

    def init(k, shape, scale=0.1):
        return (jax.random.normal(k, shape) * scale).astype(jnp.float32)

    # embedding tables (deterministic synthetic weights)
    item_table = init(ks[0], (ITEM_NUM + 1, EMBED_DIM))
    attr_table = init(ks[1], (ATTR_NUM + 1, EMBED_DIM))

    # synthetic rerank inputs
    iid_list = jax.random.randint(ks[2], (B, L), 0, ITEM_NUM + 1)
    aid_list = jax.random.randint(ks[3], (B, L, ATTR_FNUM), 0, ATTR_NUM + 1)
    labels = jax.random.bernoulli(ks[4], 0.5, (B, L)).astype(jnp.float32)

    # process_rerank_inp (augment_num = 0): embedding gathers + concat  (glue)
    iid_emb = item_table[iid_list]                                  # (B, L, 8)
    attr_emb = attr_table[aid_list].reshape(B, L, EMBED_DIM * ATTR_FNUM)
    item_emb = jnp.concatenate([iid_emb, attr_emb], axis=-1).astype(jnp.float32)

    # model parameters (MultiheadAttention in/out proj, MLP, fc_out),
    # pre-transposed so the kernel computes x @ W + b.
    params = {
        "wq": init(ks[5], (D, D)), "wk": init(ks[6], (D, D)), "wv": init(ks[7], (D, D)),
        "bq": init(ks[8], (1, D)), "bk": init(ks[9], (1, D)), "bv": init(ks[10], (1, D)),
        "wo": init(ks[11], (D, D)), "bo": init(ks[12], (1, D)),
        "w1": init(ks[13], (2 * D, MLP_H1)), "b1": init(ks[14], (1, MLP_H1)),
        "w2": init(ks[15], (MLP_H1, MLP_H2)), "b2": init(ks[16], (1, MLP_H2)),
        "wf": init(ks[17], (MLP_H2, 1)), "bf": init(ks[18], (1, 1)),
    }

    scores = jax.block_until_ready(mir_forward(item_emb, params))   # (B, L)

    # get_rerank_output: nn.BCELoss on sigmoid scores (convert_loss = 0)  (glue)
    eps = 1e-12
    p_clip = jnp.clip(scores.reshape(-1), eps, 1.0 - eps)
    y = labels.reshape(-1)
    bce = -jnp.mean(y * jnp.log(p_clip) + (1.0 - y) * jnp.log(1.0 - p_clip))
    outputs = {"logits": scores, "labels": labels, "loss": bce}
    jax.block_until_ready(outputs["loss"])

    # sanity check against pure-JAX reference
    ref = reference_forward(item_emb, params)
    np.testing.assert_allclose(np.asarray(scores), np.asarray(ref),
                               rtol=1e-2, atol=1e-2)

    print("KERNEL_OK")
</pallas_src>

<mosaic_0001>
module attributes {stable_mosaic.version = 11 : i64} {
  func.func @mir_kernel(%arg0: i32, %arg1: memref<2x8x32xf32, #tpu.memory_space<vmem>>, %arg2: memref<32x128xf32, #tpu.memory_space<vmem>>, %arg3: memref<64x96xf32, #tpu.memory_space<vmem>>, %arg4: memref<8x64xf32, #tpu.memory_space<vmem>>, %arg5: memref<2x8xf32, #tpu.memory_space<vmem>>) attributes {dimension_semantics = [#tpu.dimension_semantics<arbitrary>], iteration_bounds = array<i64: 1>, scalar_prefetch = 0 : i64, scratch_operands = 0 : i64, tpu.core_type = #tpu.core_type<tc>, window_params = [{pipeline_mode = #tpu.pipeline_mode<synchronous>, transform_indices = @transform_0, window_bounds = array<i64: 2, 8, 32>}, {pipeline_mode = #tpu.pipeline_mode<synchronous>, transform_indices = @transform_1, window_bounds = array<i64: 32, 128>}, {pipeline_mode = #tpu.pipeline_mode<synchronous>, transform_indices = @transform_2, window_bounds = array<i64: 64, 96>}, {pipeline_mode = #tpu.pipeline_mode<synchronous>, transform_indices = @transform_3, window_bounds = array<i64: 8, 64>}, {pipeline_mode = #tpu.pipeline_mode<synchronous>, transform_indices = @transform_4, window_bounds = array<i64: 2, 8>}]} {
    %c0 = arith.constant 0 : index
    %c0_0 = arith.constant 0 : index
    %c0_1 = arith.constant 0 : index
    %0 = vector.load %arg1[%c0, %c0_0, %c0_1] : memref<2x8x32xf32, #tpu.memory_space<vmem>>, vector<2x8x32xf32>
    %1 = vector.shape_cast %0 : vector<2x8x32xf32> to vector<16x32xf32>
    %c0_2 = arith.constant 0 : index
    %c0_3 = arith.constant 0 : index
    %2 = vector.load %arg2[%c0_2, %c0_3] : memref<32x128xf32, #tpu.memory_space<vmem>>, vector<32x16xf32>
    %cst = arith.constant dense<0.000000e+00> : vector<16x16xf32>
    %3 = tpu.matmul %1, %2, %cst {dimension_numbers = #tpu.dot_dimension_numbers<[1], [0], [0], [1], [0, 0, 1, 1], [], []>} : vector<16x32xf32>, vector<32x16xf32>, vector<16x16xf32> -> vector<16x16xf32>
    %c0_4 = arith.constant 0 : index
    %c0_5 = arith.constant 0 : index
    %4 = vector.load %arg4[%c0_4, %c0_5] : memref<8x64xf32, #tpu.memory_space<vmem>>, vector<1x16xf32>
    %5 = vector.broadcast %4 : vector<1x16xf32> to vector<16x16xf32>
    %6 = arith.addf %3, %5 : vector<16x16xf32>
    %c0_6 = arith.constant 0 : index
    %c32 = arith.constant 32 : index
    %7 = vector.load %arg2[%c0_6, %c32] : memref<32x128xf32, #tpu.memory_space<vmem>>, vector<32x16xf32>
    %cst_7 = arith.constant dense<0.000000e+00> : vector<16x16xf32>
    %8 = tpu.matmul %1, %7, %cst_7 {dimension_numbers = #tpu.dot_dimension_numbers<[1], [0], [0], [1], [0, 0, 1, 1], [], []>} : vector<16x32xf32>, vector<32x16xf32>, vector<16x16xf32> -> vector<16x16xf32>
    %c1 = arith.constant 1 : index
    %c0_8 = arith.constant 0 : index
    %9 = vector.load %arg4[%c1, %c0_8] : memref<8x64xf32, #tpu.memory_space<vmem>>, vector<1x16xf32>
    %10 = vector.broadcast %9 : vector<1x16xf32> to vector<16x16xf32>
    %11 = arith.addf %8, %10 : vector<16x16xf32>
    %c0_9 = arith.constant 0 : index
    %c64 = arith.constant 64 : index
    %12 = vector.load %arg2[%c0_9, %c64] : memref<32x128xf32, #tpu.memory_space<vmem>>, vector<32x16xf32>
    %cst_10 = arith.constant dense<0.000000e+00> : vector<16x16xf32>
    %13 = tpu.matmul %1, %12, %cst_10 {dimension_numbers = #tpu.dot_dimension_numbers<[1], [0], [0], [1], [0, 0, 1, 1], [], []>} : vector<16x32xf32>, vector<32x16xf32>, vector<16x16xf32> -> vector<16x16xf32>
    %c2 = arith.constant 2 : index
    %c0_11 = arith.constant 0 : index
    %14 = vector.load %arg4[%c2, %c0_11] : memref<8x64xf32, #tpu.memory_space<vmem>>, vector<1x16xf32>
    %15 = vector.broadcast %14 : vector<1x16xf32> to vector<16x16xf32>
    %16 = arith.addf %13, %15 : vector<16x16xf32>
    %17 = vector.shape_cast %6 : vector<16x16xf32> to vector<2x8x16xf32>
    %18 = vector.shape_cast %11 : vector<16x16xf32> to vector<2x8x16xf32>
    %19 = vector.shape_cast %16 : vector<16x16xf32> to vector<2x8x16xf32>
    "tpu.trace_start"() <{level = 10 : i32, message = "bld,bmd->blm"}> : () -> ()
    %cst_12 = arith.constant dense<0.000000e+00> : vector<2x8x8xf32>
    %20 = tpu.matmul %17, %18, %cst_12 {dimension_numbers = #tpu.dot_dimension_numbers<[2], [2], [1], [1], [0, 0, 0, 1, 1, 1], [0], [0]>} : vector<2x8x16xf32>, vector<2x8x16xf32>, vector<2x8x8xf32> -> vector<2x8x8xf32>
    "tpu.trace_stop"() : () -> ()
    %cst_13 = arith.constant 2.500000e-01 : f32
    %21 = vector.broadcast %cst_13 : f32 to vector<2x8x8xf32>
    %22 = arith.mulf %20, %21 : vector<2x8x8xf32>
    %cst_14 = arith.constant dense<0xFF800000> : vector<2x8xf32>
    %23 = vector.multi_reduction <maximumf>, %22, %cst_14 [2] : vector<2x8x8xf32> to vector<2x8xf32>
    %24 = vector.shape_cast %23 : vector<2x8xf32> to vector<2x8x1xf32>
    %25 = vector.broadcast %24 : vector<2x8x1xf32> to vector<2x8x8xf32>
    %26 = arith.subf %22, %25 : vector<2x8x8xf32>
    %27 = math.exp %26 : vector<2x8x8xf32>
    %cst_15 = arith.constant dense<0.000000e+00> : vector<2x8xf32>
    %28 = vector.multi_reduction <add>, %27, %cst_15 [2] : vector<2x8x8xf32> to vector<2x8xf32>
    %29 = vector.shape_cast %28 : vector<2x8xf32> to vector<2x8x1xf32>
    %30 = tpu.reciprocal %29 {approx = true} : vector<2x8x1xf32> -> vector<2x8x1xf32>
    %31 = vector.broadcast %30 : vector<2x8x1xf32> to vector<2x8x8xf32>
    %32 = arith.mulf %27, %31 : vector<2x8x8xf32>
    "tpu.trace_start"() <{level = 10 : i32, message = "blm,bmd->bld"}> : () -> ()
    %cst_16 = arith.constant dense<0.000000e+00> : vector<2x8x16xf32>
    %33 = tpu.matmul %32, %19, %cst_16 {dimension_numbers = #tpu.dot_dimension_numbers<[2], [1], [1], [2], [0, 0, 0, 1, 1, 2], [0], [0]>} : vector<2x8x8xf32>, vector<2x8x16xf32>, vector<2x8x16xf32> -> vector<2x8x16xf32>
    "tpu.trace_stop"() : () -> ()
    %34 = vector.shape_cast %33 : vector<2x8x16xf32> to vector<16x16xf32>
    %c0_17 = arith.constant 0 : index
    %c96 = arith.constant 96 : index
    %35 = vector.load %arg2[%c0_17, %c96] : memref<32x128xf32, #tpu.memory_space<vmem>>, vector<16x32xf32>
    %cst_18 = arith.constant dense<0.000000e+00> : vector<16x32xf32>
    %36 = tpu.matmul %34, %35, %cst_18 {dimension_numbers = #tpu.dot_dimension_numbers<[1], [0], [0], [1], [0, 0, 1, 1], [], []>} : vector<16x16xf32>, vector<16x32xf32>, vector<16x32xf32> -> vector<16x32xf32>
    %c0_19 = arith.constant 0 : index
    %c16 = arith.constant 16 : index
    %37 = vector.load %arg2[%c0_19, %c16] : memref<32x128xf32, #tpu.memory_space<vmem>>, vector<32x16xf32>
    %cst_20 = arith.constant dense<0.000000e+00> : vector<16x16xf32>
    %38 = tpu.matmul %1, %37, %cst_20 {dimension_numbers = #tpu.dot_dimension_numbers<[1], [0], [0], [1], [0, 0, 1, 1], [], []>} : vector<16x32xf32>, vector<32x16xf32>, vector<16x16xf32> -> vector<16x16xf32>
    %c0_21 = arith.constant 0 : index
    %c16_22 = arith.constant 16 : index
    %39 = vector.load %arg4[%c0_21, %c16_22] : memref<8x64xf32, #tpu.memory_space<vmem>>, vector<1x16xf32>
    %40 = vector.broadcast %39 : vector<1x16xf32> to vector<16x16xf32>
    %41 = arith.addf %38, %40 : vector<16x16xf32>
    %c0_23 = arith.constant 0 : index
    %c48 = arith.constant 48 : index
    %42 = vector.load %arg2[%c0_23, %c48] : memref<32x128xf32, #tpu.memory_space<vmem>>, vector<32x16xf32>
    %cst_24 = arith.constant dense<0.000000e+00> : vector<16x16xf32>
    %43 = tpu.matmul %1, %42, %cst_24 {dimension_numbers = #tpu.dot_dimension_numbers<[1], [0], [0], [1], [0, 0, 1, 1], [], []>} : vector<16x32xf32>, vector<32x16xf32>, vector<16x16xf32> -> vector<16x16xf32>
    %c1_25 = arith.constant 1 : index
    %c16_26 = arith.constant 16 : index
    %44 = vector.load %arg4[%c1_25, %c16_26] : memref<8x64xf32, #tpu.memory_space<vmem>>, vector<1x16xf32>
    %45 = vector.broadcast %44 : vector<1x16xf32> to vector<16x16xf32>
    %46 = arith.addf %43, %45 : vector<16x16xf32>
    %c0_27 = arith.constant 0 : index
    %c80 = arith.constant 80 : index
    %47 = vector.load %arg2[%c0_27, %c80] : memref<32x128xf32, #tpu.memory_space<vmem>>, vector<32x16xf32>
    %cst_28 = arith.constant dense<0.000000e+00> : vector<16x16xf32>
    %48 = tpu.matmul %1, %47, %cst_28 {dimension_numbers = #tpu.dot_dimension_numbers<[1], [0], [0], [1], [0, 0, 1, 1], [], []>} : vector<16x32xf32>, vector<32x16xf32>, vector<16x16xf32> -> vector<16x16xf32>
    %c2_29 = arith.constant 2 : index
    %c16_30 = arith.constant 16 : index
    %49 = vector.load %arg4[%c2_29, %c16_30] : memref<8x64xf32, #tpu.memory_space<vmem>>, vector<1x16xf32>
    %50 = vector.broadcast %49 : vector<1x16xf32> to vector<16x16xf32>
    %51 = arith.addf %48, %50 : vector<16x16xf32>
    %52 = vector.shape_cast %41 : vector<16x16xf32> to vector<2x8x16xf32>
    %53 = vector.shape_cast %46 : vector<16x16xf32> to vector<2x8x16xf32>
    %54 = vector.shape_cast %51 : vector<16x16xf32> to vector<2x8x16xf32>
    "tpu.trace_start"() <{level = 10 : i32, message = "bld,bmd->blm"}> : () -> ()
    %cst_31 = arith.constant dense<0.000000e+00> : vector<2x8x8xf32>
    %55 = tpu.matmul %52, %53, %cst_31 {dimension_numbers = #tpu.dot_dimension_numbers<[2], [2], [1], [1], [0, 0, 0, 1, 1, 1], [0], [0]>} : vector<2x8x16xf32>, vector<2x8x16xf32>, vector<2x8x8xf32> -> vector<2x8x8xf32>
    "tpu.trace_stop"() : () -> ()
    %cst_32 = arith.constant 2.500000e-01 : f32
    %56 = vector.broadcast %cst_32 : f32 to vector<2x8x8xf32>
    %57 = arith.mulf %55, %56 : vector<2x8x8xf32>
    %cst_33 = arith.constant dense<0xFF800000> : vector<2x8xf32>
    %58 = vector.multi_reduction <maximumf>, %57, %cst_33 [2] : vector<2x8x8xf32> to vector<2x8xf32>
    %59 = vector.shape_cast %58 : vector<2x8xf32> to vector<2x8x1xf32>
    %60 = vector.broadcast %59 : vector<2x8x1xf32> to vector<2x8x8xf32>
    %61 = arith.subf %57, %60 : vector<2x8x8xf32>
    %62 = math.exp %61 : vector<2x8x8xf32>
    %cst_34 = arith.constant dense<0.000000e+00> : vector<2x8xf32>
    %63 = vector.multi_reduction <add>, %62, %cst_34 [2] : vector<2x8x8xf32> to vector<2x8xf32>
    %64 = vector.shape_cast %63 : vector<2x8xf32> to vector<2x8x1xf32>
    %65 = tpu.reciprocal %64 {approx = true} : vector<2x8x1xf32> -> vector<2x8x1xf32>
    %66 = vector.broadcast %65 : vector<2x8x1xf32> to vector<2x8x8xf32>
    %67 = arith.mulf %62, %66 : vector<2x8x8xf32>
    "tpu.trace_start"() <{level = 10 : i32, message = "blm,bmd->bld"}> : () -> ()
    %cst_35 = arith.constant dense<0.000000e+00> : vector<2x8x16xf32>
    %68 = tpu.matmul %67, %54, %cst_35 {dimension_numbers = #tpu.dot_dimension_numbers<[2], [1], [1], [2], [0, 0, 0, 1, 1, 2], [0], [0]>} : vector<2x8x8xf32>, vector<2x8x16xf32>, vector<2x8x16xf32> -> vector<2x8x16xf32>
    "tpu.trace_stop"() : () -> ()
    %69 = vector.shape_cast %68 : vector<2x8x16xf32> to vector<16x16xf32>
    %c16_36 = arith.constant 16 : index
    %c96_37 = arith.constant 96 : index
    %70 = vector.load %arg2[%c16_36, %c96_37] : memref<32x128xf32, #tpu.memory_space<vmem>>, vector<16x32xf32>
    %cst_38 = arith.constant dense<0.000000e+00> : vector<16x32xf32>
    %71 = tpu.matmul %69, %70, %cst_38 {dimension_numbers = #tpu.dot_dimension_numbers<[1], [0], [0], [1], [0, 0, 1, 1], [], []>} : vector<16x16xf32>, vector<16x32xf32>, vector<16x32xf32> -> vector<16x32xf32>
    %72 = arith.addf %36, %71 : vector<16x32xf32>
    %c3 = arith.constant 3 : index
    %c0_39 = arith.constant 0 : index
    %73 = vector.load %arg4[%c3, %c0_39] : memref<8x64xf32, #tpu.memory_space<vmem>>, vector<1x32xf32>
    %74 = vector.broadcast %73 : vector<1x32xf32> to vector<16x32xf32>
    %75 = arith.addf %72, %74 : vector<16x32xf32>
    %c0_40 = arith.constant 0 : index
    %c0_41 = arith.constant 0 : index
    %76 = vector.load %arg3[%c0_40, %c0_41] : memref<64x96xf32, #tpu.memory_space<vmem>>, vector<32x64xf32>
    %cst_42 = arith.constant dense<0.000000e+00> : vector<16x64xf32>
    %77 = tpu.matmul %75, %76, %cst_42 {dimension_numbers = #tpu.dot_dimension_numbers<[1], [0], [0], [1], [0, 0, 1, 1], [], []>} : vector<16x32xf32>, vector<32x64xf32>, vector<16x64xf32> -> vector<16x64xf32>
    %c32_43 = arith.constant 32 : index
    %c0_44 = arith.constant 0 : index
    %78 = vector.load %arg3[%c32_43, %c0_44] : memref<64x96xf32, #tpu.memory_space<vmem>>, vector<32x64xf32>
    %cst_45 = arith.constant dense<0.000000e+00> : vector<16x64xf32>
    %79 = tpu.matmul %1, %78, %cst_45 {dimension_numbers = #tpu.dot_dimension_numbers<[1], [0], [0], [1], [0, 0, 1, 1], [], []>} : vector<16x32xf32>, vector<32x64xf32>, vector<16x64xf32> -> vector<16x64xf32>
    %80 = arith.addf %77, %79 : vector<16x64xf32>
    %c4 = arith.constant 4 : index
    %c0_46 = arith.constant 0 : index
    %81 = vector.load %arg4[%c4, %c0_46] : memref<8x64xf32, #tpu.memory_space<vmem>>, vector<1x64xf32>
    %82 = vector.broadcast %81 : vector<1x64xf32> to vector<16x64xf32>
    %83 = arith.addf %80, %82 : vector<16x64xf32>
    %cst_47 = arith.constant 0.000000e+00 : f32
    %84 = vector.broadcast %cst_47 : f32 to vector<16x64xf32>
    %85 = arith.maximumf %83, %84 : vector<16x64xf32>
    %c0_48 = arith.constant 0 : index
    %c64_49 = arith.constant 64 : index
    %86 = vector.load %arg3[%c0_48, %c64_49] : memref<64x96xf32, #tpu.memory_space<vmem>>, vector<64x32xf32>
    %cst_50 = arith.constant dense<0.000000e+00> : vector<16x32xf32>
    %87 = tpu.matmul %85, %86, %cst_50 {dimension_numbers = #tpu.dot_dimension_numbers<[1], [0], [0], [1], [0, 0, 1, 1], [], []>} : vector<16x64xf32>, vector<64x32xf32>, vector<16x32xf32> -> vector<16x32xf32>
    %c5 = arith.constant 5 : index
    %c0_51 = arith.constant 0 : index
    %88 = vector.load %arg4[%c5, %c0_51] : memref<8x64xf32, #tpu.memory_space<vmem>>, vector<1x32xf32>
    %89 = vector.broadcast %88 : vector<1x32xf32> to vector<16x32xf32>
    %90 = arith.addf %87, %89 : vector<16x32xf32>
    %cst_52 = arith.constant 0.000000e+00 : f32
    %91 = vector.broadcast %cst_52 : f32 to vector<16x32xf32>
    %92 = arith.maximumf %90, %91 : vector<16x32xf32>
    %93 = vector.shape_cast %92 : vector<16x32xf32> to vector<2x8x32xf32>
    %c6 = arith.constant 6 : index
    %c0_53 = arith.constant 0 : index
    %94 = vector.load %arg4[%c6, %c0_53] : memref<8x64xf32, #tpu.memory_space<vmem>>, vector<1x32xf32>
    %95 = vector.shape_cast %94 : vector<1x32xf32> to vector<1x1x32xf32>
    %96 = vector.broadcast %95 : vector<1x1x32xf32> to vector<2x8x32xf32>
    %97 = arith.mulf %93, %96 : vector<2x8x32xf32>
    %cst_54 = arith.constant dense<0.000000e+00> : vector<2x8xf32>
    %98 = vector.multi_reduction <add>, %97, %cst_54 [2] : vector<2x8x32xf32> to vector<2x8xf32>
    %c7 = arith.constant 7 : index
    %c0_55 = arith.constant 0 : index
    %99 = vector.load %arg4[%c7, %c0_55] : memref<8x64xf32, #tpu.memory_space<vmem>>, vector<1x1xf32>
    %100 = vector.broadcast %99 : vector<1x1xf32> to vector<2x8xf32>
    %101 = arith.addf %98, %100 : vector<2x8xf32>
    %102 = arith.negf %101 : vector<2x8xf32>
    %103 = math.exp %102 : vector<2x8xf32>
    %cst_56 = arith.constant 1.000000e+00 : f32
    %104 = vector.broadcast %cst_56 : f32 to vector<2x8xf32>
    %105 = arith.addf %104, %103 : vector<2x8xf32>
    %106 = arith.divf %104, %105 : vector<2x8xf32>
    %c0_57 = arith.constant 0 : index
    %c0_58 = arith.constant 0 : index
    %107 = vector.load %arg5[%c0_57, %c0_58] : memref<2x8xf32, #tpu.memory_space<vmem>>, vector<2x8xf32>
    tpu.vector_store %arg5[%c0_57, %c0_58], %106 {strides = array<i32>} : memref<2x8xf32, #tpu.memory_space<vmem>>, vector<2x8xf32>,
    return
  }
  func.func @transform_0(%arg0: i32) -> (i32, i32, i32) {
    %c0_i32 = arith.constant 0 : i32
    %c0_i32_0 = arith.constant 0 : i32
    %c0_i32_1 = arith.constant 0 : i32
    %c0_i32_2 = arith.constant 0 : i32
    return %c0_i32, %c0_i32_0, %c0_i32_1 : i32, i32, i32
  }
  func.func @transform_1(%arg0: i32) -> (i32, i32) {
    %c0_i32 = arith.constant 0 : i32
    %c0_i32_0 = arith.constant 0 : i32
    %c0_i32_1 = arith.constant 0 : i32
    return %c0_i32, %c0_i32_0 : i32, i32
  }
  func.func @transform_2(%arg0: i32) -> (i32, i32) {
    %c0_i32 = arith.constant 0 : i32
    %c0_i32_0 = arith.constant 0 : i32
    %c0_i32_1 = arith.constant 0 : i32
    return %c0_i32, %c0_i32_0 : i32, i32
  }
  func.func @transform_3(%arg0: i32) -> (i32, i32) {
    %c0_i32 = arith.constant 0 : i32
    %c0_i32_0 = arith.constant 0 : i32
    %c0_i32_1 = arith.constant 0 : i32
    return %c0_i32, %c0_i32_0 : i32, i32
  }
  func.func @transform_4(%arg0: i32) -> (i32, i32) {
    %c0_i32 = arith.constant 0 : i32
    %c0_i32_0 = arith.constant 0 : i32
    %c0_i32_1 = arith.constant 0 : i32
    return %c0_i32, %c0_i32_0 : i32, i32
  }
}

</mosaic_0001>

<llo_original>
// kernel: tpu_custom_call.1
$region0: #{tpu_custom_call.1}
  #allocation0 [shape = 'u32[]', space=smem, size = 0x4, offset = 0x4, fixed_abs, tag = 'smem constant byte address 0x4 - core index']
  #allocation1 [shape = 'u32[144,128]{1,0:T(1,128)}', space=vmem, size = 0x12000, scoped, tag = 'internal scratch']
  %s0 = inlined_call_operand.hbm [shape: f32[2,8,32], index: 0, kind: input, shape index: {}]
  %s1 = inlined_call_operand.hbm [shape: f32[32,128], index: 1, kind: input, shape index: {}]
  %s2 = inlined_call_operand.hbm [shape: f32[64,96], index: 2, kind: input, shape index: {}]
  %s3 = inlined_call_operand.hbm [shape: f32[8,64], index: 3, kind: input, shape index: {}]
  %s4 = inlined_call_operand.hbm [shape: f32[2,8], index: 4, kind: output, shape index: {}]
  %s5 = sld [smem:[#allocation0]]
  $region42: #{tpu_custom_call.1} parent=0
    _
  %s7 = ssub.s32 1, %s5
  %s8 = scalar_select 0, %s7, %s5
  $region1: #{tpu_custom_call.1} parent=0
    #allocation2 [shape = 'u8[8192]{0}', space=vmem, size = 0x2000, scoped, tag = 'input window, operand 0, single buffered']
    #allocation3 [shape = 's32[1]{0}', space=sflag, size = 0x4, scoped, tag = 'scoped memory for tpu_custom_call.1']
    #allocation4 [shape = 's32[1]{0}', space=sflag, size = 0x4, scoped, tag = 'scoped memory for tpu_custom_call.1']
    #allocation5 [shape = 'u8[16384]{0}', space=vmem, size = 0x4000, scoped, tag = 'input window, operand 1, single buffered']
    #allocation6 [shape = 's32[1]{0}', space=sflag, size = 0x4, scoped, tag = 'scoped memory for tpu_custom_call.1']
    #allocation7 [shape = 'u8[32768]{0}', space=vmem, size = 0x8000, scoped, tag = 'input window, operand 2, single buffered']
    #allocation8 [shape = 'u8[4096]{0}', space=vmem, size = 0x1000, scoped, tag = 'input window, operand 3, single buffered']
    #allocation9 [shape = 's32[1]{0}', space=sflag, size = 0x4, scoped, tag = 'scoped memory for tpu_custom_call.1']
    #allocation10 [shape = 'u8[1024]{0}', space=vmem, size = 0x400, scoped, tag = 'output window, operand 0, single buffered']
    %9 = vsyncpa [#allocation3], 0
    %10 = vsyncpa [#allocation6], 0
    %11 = vsyncpa [#allocation9], 0
    %12 = vsyncpa [#allocation4], 0
    // Predicated region
    $region2: #{tpu_custom_call.1} parent=1 // pred_check
      _
    $region3: #{tpu_custom_call.1} parent=1 // pred_check_branch
      %14 = sbr.rel (0) target = $region5
    $region4: #{tpu_custom_call.1} parent=1 // pred_region
      %s16 = ssub.s32 256, 256
      %17 = vsyncadd [#allocation3], %s16
      %s18 = sshll.u32 [#allocation2], 4
      %s19 = int_to_ptr.vmem [resolvable:$true] %s18
      %24 = dma.hbm_to_vmem [thread:$0]  %s0, 256, %s19, [#allocation3], 128, 128, 8
    $region5: #{tpu_custom_call.1} parent=1 // pred_fallthru
      _
    // Predicated region
    $region6: #{tpu_custom_call.1} parent=1 // pred_check
      _
    $region7: #{tpu_custom_call.1} parent=1 // pred_check_branch
      %26 = sbr.rel (0) target = $region9
    $region8: #{tpu_custom_call.1} parent=1 // pred_region
      %s28 = ssub.s32 512, 512
      %29 = vsyncadd [#allocation6], %s28
      %s30 = sshll.u32 [#allocation5], 4
      %s31 = int_to_ptr.vmem [resolvable:$true] %s30
      %36 = dma.hbm_to_vmem [thread:$0]  %s1, 512, %s31, [#allocation6], 128, 128, 8
    $region9: #{tpu_custom_call.1} parent=1 // pred_fallthru
      _
    // Predicated region
    $region10: #{tpu_custom_call.1} parent=1 // pred_check
      _
    $region11: #{tpu_custom_call.1} parent=1 // pred_check_branch
      %38 = sbr.rel (0) target = $region13
    $region12: #{tpu_custom_call.1} parent=1 // pred_region
      %s40 = ssub.s32 1024, 1024
      %41 = vsyncadd [#allocation6], %s40
      %s42 = sshll.u32 [#allocation7], 4
      %s43 = int_to_ptr.vmem [resolvable:$true] %s42
      %48 = dma.hbm_to_vmem [thread:$0]  %s2, 1024, %s43, [#allocation6], 128, 128, 8
    $region13: #{tpu_custom_call.1} parent=1 // pred_fallthru
      _
    // Predicated region
    $region14: #{tpu_custom_call.1} parent=1 // pred_check
      _
    $region15: #{tpu_custom_call.1} parent=1 // pred_check_branch
      %50 = sbr.rel (0) target = $region17
    $region16: #{tpu_custom_call.1} parent=1 // pred_region
      %s52 = ssub.s32 128, 128
      %53 = vsyncadd [#allocation9], %s52
      %s55 = sshll.u32 [#allocation8], 4
      %s56 = int_to_ptr.vmem [resolvable:$true] %s55
      %58 = dma.hbm_to_vmem [thread:$0]  %s3, 128, %s56, [#allocation9]
    $region17: #{tpu_custom_call.1} parent=1 // pred_fallthru
      _
    // Predicated region
    $region18: #{tpu_custom_call.1} parent=1 // pred_check
      _
    $region19: #{tpu_custom_call.1} parent=1 // pred_check_branch
      %60 = sbr.rel (0) target = $region21
    $region20: #{tpu_custom_call.1} parent=1 // pred_region
      %61 = dma.done [#allocation3], 256
    $region21: #{tpu_custom_call.1} parent=1 // pred_fallthru
      _
    // Predicated region
    $region22: #{tpu_custom_call.1} parent=1 // pred_check
      _
    $region23: #{tpu_custom_call.1} parent=1 // pred_check_branch
      %63 = sbr.rel (0) target = $region25
    $region24: #{tpu_custom_call.1} parent=1 // pred_region
      %64 = dma.done [#allocation6], 512
    $region25: #{tpu_custom_call.1} parent=1 // pred_fallthru
      _
    // Predicated region
    $region26: #{tpu_custom_call.1} parent=1 // pred_check
      _
    $region27: #{tpu_custom_call.1} parent=1 // pred_check_branch
      %66 = sbr.rel (0) target = $region29
    $region28: #{tpu_custom_call.1} parent=1 // pred_region
      %67 = dma.done [#allocation6], 1024
    $region29: #{tpu_custom_call.1} parent=1 // pred_fallthru
      _
    // Predicated region
    $region30: #{tpu_custom_call.1} parent=1 // pred_check
      _
    $region31: #{tpu_custom_call.1} parent=1 // pred_check_branch
      %69 = sbr.rel (0) target = $region33
    $region32: #{tpu_custom_call.1} parent=1 // pred_region
      %70 = dma.done [#allocation9], 128
    $region33: #{tpu_custom_call.1} parent=1 // pred_fallthru
      _
    %v71 = vld [vmem:[#allocation2] sm:$0xff]
    %v72 = vld [vmem:[#allocation2 + $0x8] sm:$0xff]
    %v73 = vld [vmem:[#allocation5] sm:$0xff]
    %v74 = vld [vmem:[#allocation5 + $0x8] sm:$0xff]
    %v75 = vld [vmem:[#allocation5 + $0x10] sm:$0xff]
    %v76 = vld [vmem:[#allocation5 + $0x18] sm:$0xff]
    %v77 = vld [vmem:[#allocation8] sm:$0x1]
    %v78 = vlaneseq
    %v79 = vshrl.u32 %v78, 7
    %v80 = vsub.s32 0, %v79
    %v81 = vrot.slane %v77, %v80
    %vm82 = vcmask 261120
    %v84 = vsel %vm82, %v71, 0
    %v87 = vsel %vm82, %v72, 0
    %89 = vmatprep.subr.mxu0 0.0
    %90 = vmatpush1.msra.mxu0 0.0
    %91 = vmatprep.subr.mxu0 0.0
    %92 = vmatpush1.msra.mxu0 0.0
    %93 = vmatprep.subr.mxu0 0.0
    %94 = vmatpush1.msra.mxu0 0.0
    %95 = vmatprep.subr.mxu0 0.0
    %96 = vmatpush1.msra.mxu0 0.0
    %97 = vmatprep.subr.mxu0 0.0
    %98 = vmatpush1.msra.mxu0 0.0
    %99 = vmatprep.subr.mxu0 0.0
    %100 = vmatpush1.msra.mxu0 0.0
    %101 = vmatprep.subr.mxu0 0.0
    %102 = vmatpush1.msra.mxu0 0.0
    %103 = vmatprep.subr.mxu0 0.0
    %104 = vmatpush1.msra.mxu0 0.0
    %105 = vmatprep.subr.mxu0 0.0
    %106 = vmatpush1.msra.mxu0 0.0
    %107 = vmatprep.subr.mxu0 0.0
    %108 = vmatpush1.msra.mxu0 0.0
    %109 = vmatprep.subr.mxu0 0.0
    %110 = vmatpush1.msra.mxu0 0.0
    %111 = vmatprep.subr.mxu0 0.0
    %112 = vmatpush1.msra.mxu0 0.0
    %113 = vmatprep.subr.mxu0 0.0
    %114 = vmatpush1.msra.mxu0 %v76
    %115 = vmatprep.subr.mxu0 0.0
    %116 = vmatpush1.msra.mxu0 %v75
    %117 = vmatprep.subr.mxu0 0.0
    %118 = vmatpush1.msra.mxu0 %v74
    %119 = vmatprep.subr.mxu0 0.0
    %120 = vmatpush1.msra.mxu0 %v73
    %121 = vmatprep.subr.mxu0 0.0
    %122 = vmatpush2.msra.mxu0 0.0
    %123 = vmatprep.subr.mxu0 0.0
    %124 = vmatpush2.msra.mxu0 0.0
    %125 = vmatprep.subr.mxu0 0.0
    %126 = vmatpush2.msra.mxu0 0.0
    %127 = vmatprep.subr.mxu0 0.0
    %128 = vmatpush2.msra.mxu0 0.0
    %129 = vmatprep.subr.mxu0 0.0
    %130 = vmatpush2.msra.mxu0 0.0
    %131 = vmatprep.subr.mxu0 0.0
    %132 = vmatpush2.msra.mxu0 0.0
    %133 = vmatprep.subr.mxu0 0.0
    %134 = vmatpush2.msra.mxu0 0.0
    %135 = vmatprep.subr.mxu0 0.0
    %136 = vmatpush2.msra.mxu0 0.0
    %137 = vmatprep.subr.mxu0 0.0
    %138 = vmatpush2.msra.mxu0 0.0
    %139 = vmatprep.subr.mxu0 0.0
    %140 = vmatpush2.msra.mxu0 0.0
    %141 = vmatprep.subr.mxu0 0.0
    %142 = vmatpush2.msra.mxu0 0.0
    %143 = vmatprep.subr.mxu0 0.0
    %144 = vmatpush2.msra.mxu0 0.0
    %145 = vmatprep.subr.mxu0 0.0
    %146 = vmatpush2.msra.mxu0 0.0
    %147 = vmatprep.subr.mxu0 0.0
    %148 = vmatpush2.msra.mxu0 0.0
    %149 = vmatprep.subr.mxu0 0.0
    %150 = vmatpush2.msra.mxu0 0.0
    %151 = vmatprep.subr.mxu0 0.0
    %152 = vmatpush2.msra.mxu0 0.0
    %153 = vmatprep.mubr.f32.mxu0 0.0
    %154 = vmatmul.mubr.f32.gmra.mxu0 %v84
    %v155 = vpop.f32.mrf.mxu0
    %v156 = vadd.f32 %v81, %v155
    %v157 = vpop.f32.mrf.mxu0
    %158 = vmatprep.mubr.f32.mxu0 0.0
    %159 = vmatmul.mubr.f32.gmra.mxu0 %v87
    %v160 = vpop.f32.mrf.mxu0
    %v161 = vadd.f32 %v81, %v160
    %v162 = vpop.f32.mrf.mxu0
    %163 = vdwg.mxu0
    %v164 = vld [vmem:[#allocation8 + $0x1] sm:$0x1]
    %v165 = vlaneseq
    %v166 = vshrl.u32 %v165, 7
    %v167 = vsub.s32 0, %v166
    %v168 = vrot.slane %v164, %v167
    %173 = vrot.lane.b32.xlu0 %v73, 96
    %v174 = vpop.permute.xlu0 %173
    %175 = vrot.lane.b32.xlu0 %v74, 96
    %v176 = vpop.permute.xlu0 %175
    %177 = vrot.lane.b32.xlu0 %v75, 96
    %v178 = vpop.permute.xlu0 %177
    %179 = vrot.lane.b32.xlu0 %v76, 96
    %v180 = vpop.permute.xlu0 %179
    %185 = vmatprep.subr.mxu0 0.0
    %186 = vmatpush1.msra.mxu0 0.0
    %187 = vmatprep.subr.mxu0 0.0
    %188 = vmatpush1.msra.mxu0 0.0
    %189 = vmatprep.subr.mxu0 0.0
    %190 = vmatpush1.msra.mxu0 0.0
    %191 = vmatprep.subr.mxu0 0.0
    %192 = vmatpush1.msra.mxu0 0.0
    %193 = vmatprep.subr.mxu0 0.0
    %194 = vmatpush1.msra.mxu0 0.0
    %195 = vmatprep.subr.mxu0 0.0
    %196 = vmatpush1.msra.mxu0 0.0
    %197 = vmatprep.subr.mxu0 0.0
    %198 = vmatpush1.msra.mxu0 0.0
    %199 = vmatprep.subr.mxu0 0.0
    %200 = vmatpush1.msra.mxu0 0.0
    %201 = vmatprep.subr.mxu0 0.0
    %202 = vmatpush1.msra.mxu0 0.0
    %203 = vmatprep.subr.mxu0 0.0
    %204 = vmatpush1.msra.mxu0 0.0
    %205 = vmatprep.subr.mxu0 0.0
    %206 = vmatpush1.msra.mxu0 0.0
    %207 = vmatprep.subr.mxu0 0.0
    %208 = vmatpush1.msra.mxu0 0.0
    %209 = vmatprep.subr.mxu0 0.0
    %210 = vmatpush1.msra.mxu0 %v180
    %211 = vmatprep.subr.mxu0 0.0
    %212 = vmatpush1.msra.mxu0 %v178
    %213 = vmatprep.subr.mxu0 0.0
    %214 = vmatpush1.msra.mxu0 %v176
    %215 = vmatprep.subr.mxu0 0.0
    %216 = vmatpush1.msra.mxu0 %v174
    %217 = vmatprep.subr.mxu0 0.0
    %218 = vmatpush2.msra.mxu0 0.0
    %219 = vmatprep.subr.mxu0 0.0
    %220 = vmatpush2.msra.mxu0 0.0
    %221 = vmatprep.subr.mxu0 0.0
    %222 = vmatpush2.msra.mxu0 0.0
    %223 = vmatprep.subr.mxu0 0.0
    %224 = vmatpush2.msra.mxu0 0.0
    %225 = vmatprep.subr.mxu0 0.0
    %226 = vmatpush2.msra.mxu0 0.0
    %227 = vmatprep.subr.mxu0 0.0
    %228 = vmatpush2.msra.mxu0 0.0
    %229 = vmatprep.subr.mxu0 0.0
    %230 = vmatpush2.msra.mxu0 0.0
    %231 = vmatprep.subr.mxu0 0.0
    %232 = vmatpush2.msra.mxu0 0.0
    %233 = vmatprep.subr.mxu0 0.0
    %234 = vmatpush2.msra.mxu0 0.0
    %235 = vmatprep.subr.mxu0 0.0
    %236 = vmatpush2.msra.mxu0 0.0
    %237 = vmatprep.subr.mxu0 0.0
    %238 = vmatpush2.msra.mxu0 0.0
    %239 = vmatprep.subr.mxu0 0.0
    %240 = vmatpush2.msra.mxu0 0.0
    %241 = vmatprep.subr.mxu0 0.0
    %242 = vmatpush2.msra.mxu0 0.0
    %243 = vmatprep.subr.mxu0 0.0
    %244 = vmatpush2.msra.mxu0 0.0
    %245 = vmatprep.subr.mxu0 0.0
    %246 = vmatpush2.msra.mxu0 0.0
    %247 = vmatprep.subr.mxu0 0.0
    %248 = vmatpush2.msra.mxu0 0.0
    %249 = vmatprep.mubr.f32.mxu0 0.0
    %250 = vmatmul.mubr.f32.gmra.mxu0 %v84
    %v251 = vpop.f32.mrf.mxu0
    %v252 = vadd.f32 %v168, %v251
    %v253 = vpop.f32.mrf.mxu0
    %254 = vmatprep.mubr.f32.mxu0 0.0
    %255 = vmatmul.mubr.f32.gmra.mxu0 %v87
    %v256 = vpop.f32.mrf.mxu0
    %v257 = vadd.f32 %v168, %v256
    %v258 = vpop.f32.mrf.mxu0
    %259 = vdwg.mxu0
    %v260 = vld [vmem:[#allocation8 + $0x2] sm:$0x1]
    %v261 = vlaneseq
    %v262 = vshrl.u32 %v261, 7
    %v263 = vsub.s32 0, %v262
    %v264 = vrot.slane %v260, %v263
    %265 = vrot.lane.b32.xlu0 %v73, 64
    %v266 = vpop.permute.xlu0 %265
    %267 = vrot.lane.b32.xlu0 %v74, 64
    %v268 = vpop.permute.xlu0 %267
    %269 = vrot.lane.b32.xlu0 %v75, 64
    %v270 = vpop.permute.xlu0 %269
    %271 = vrot.lane.b32.xlu0 %v76, 64
    %v272 = vpop.permute.xlu0 %271
    %277 = vmatprep.subr.mxu0 0.0
    %278 = vmatpush1.msra.mxu0 0.0
    %279 = vmatprep.subr.mxu0 0.0
    %280 = vmatpush1.msra.mxu0 0.0
    %281 = vmatprep.subr.mxu0 0.0
    %282 = vmatpush1.msra.mxu0 0.0
    %283 = vmatprep.subr.mxu0 0.0
    %284 = vmatpush1.msra.mxu0 0.0
    %285 = vmatprep.subr.mxu0 0.0
    %286 = vmatpush1.msra.mxu0 0.0
    %287 = vmatprep.subr.mxu0 0.0
    %288 = vmatpush1.msra.mxu0 0.0
    %289 = vmatprep.subr.mxu0 0.0
    %290 = vmatpush1.msra.mxu0 0.0
    %291 = vmatprep.subr.mxu0 0.0
    %292 = vmatpush1.msra.mxu0 0.0
    %293 = vmatprep.subr.mxu0 0.0
    %294 = vmatpush1.msra.mxu0 0.0
    %295 = vmatprep.subr.mxu0 0.0
    %296 = vmatpush1.msra.mxu0 0.0
    %297 = vmatprep.subr.mxu0 0.0
    %298 = vmatpush1.msra.mxu0 0.0
    %299 = vmatprep.subr.mxu0 0.0
    %300 = vmatpush1.msra.mxu0 0.0
    %301 = vmatprep.subr.mxu0 0.0
    %302 = vmatpush1.msra.mxu0 %v272
    %303 = vmatprep.subr.mxu0 0.0
    %304 = vmatpush1.msra.mxu0 %v270
    %305 = vmatprep.subr.mxu0 0.0
    %306 = vmatpush1.msra.mxu0 %v268
    %307 = vmatprep.subr.mxu0 0.0
    %308 = vmatpush1.msra.mxu0 %v266
    %309 = vmatprep.subr.mxu0 0.0
    %310 = vmatpush2.msra.mxu0 0.0
    %311 = vmatprep.subr.mxu0 0.0
    %312 = vmatpush2.msra.mxu0 0.0
    %313 = vmatprep.subr.mxu0 0.0
    %314 = vmatpush2.msra.mxu0 0.0
    %315 = vmatprep.subr.mxu0 0.0
    %316 = vmatpush2.msra.mxu0 0.0
    %317 = vmatprep.subr.mxu0 0.0
    %318 = vmatpush2.msra.mxu0 0.0
    %319 = vmatprep.subr.mxu0 0.0
    %320 = vmatpush2.msra.mxu0 0.0
    %321 = vmatprep.subr.mxu0 0.0
    %322 = vmatpush2.msra.mxu0 0.0
    %323 = vmatprep.subr.mxu0 0.0
    %324 = vmatpush2.msra.mxu0 0.0
    %325 = vmatprep.subr.mxu0 0.0
    %326 = vmatpush2.msra.mxu0 0.0
    %327 = vmatprep.subr.mxu0 0.0
    %328 = vmatpush2.msra.mxu0 0.0
    %329 = vmatprep.subr.mxu0 0.0
    %330 = vmatpush2.msra.mxu0 0.0
    %331 = vmatprep.subr.mxu0 0.0
    %332 = vmatpush2.msra.mxu0 0.0
    %333 = vmatprep.subr.mxu0 0.0
    %334 = vmatpush2.msra.mxu0 0.0
    %335 = vmatprep.subr.mxu0 0.0
    %336 = vmatpush2.msra.mxu0 0.0
    %337 = vmatprep.subr.mxu0 0.0
    %338 = vmatpush2.msra.mxu0 0.0
    %339 = vmatprep.subr.mxu0 0.0
    %340 = vmatpush2.msra.mxu0 0.0
    %341 = vmatprep.mubr.f32.mxu0 0.0
    %342 = vmatmul.mubr.f32.gmra.mxu0 %v84
    %v343 = vpop.f32.mrf.mxu0
    %v344 = vadd.f32 %v264, %v343
    %v345 = vpop.f32.mrf.mxu0
    %346 = vmatprep.mubr.f32.mxu0 0.0
    %347 = vmatmul.mubr.f32.gmra.mxu0 %v87
    %v348 = vpop.f32.mrf.mxu0
    %v349 = vadd.f32 %v264, %v348
    %v350 = vpop.f32.mrf.mxu0
    %351 = vdwg.mxu0
    %vm352 = vcmask 130048
    %v354 = vsel %vm352, %v156, 0
    %v357 = vsel %vm352, %v252, 0
    %359 = vmatprep.subr.mxu0 0.0
    %360 = vmatpush1.xpose.msra.mxu0 0.0
    %361 = vmatprep.subr.mxu0 0.0
    %362 = vmatpush1.xpose.msra.mxu0 0.0
    %363 = vmatprep.subr.mxu0 0.0
    %364 = vmatpush1.xpose.msra.mxu0 0.0
    %365 = vmatprep.subr.mxu0 0.0
    %366 = vmatpush1.xpose.msra.mxu0 0.0
    %367 = vmatprep.subr.mxu0 0.0
    %368 = vmatpush1.xpose.msra.mxu0 0.0
    %369 = vmatprep.subr.mxu0 0.0
    %370 = vmatpush1.xpose.msra.mxu0 0.0
    %371 = vmatprep.subr.mxu0 0.0
    %372 = vmatpush1.xpose.msra.mxu0 0.0
    %373 = vmatprep.subr.mxu0 0.0
    %374 = vmatpush1.xpose.msra.mxu0 0.0
    %375 = vmatprep.subr.mxu0 0.0
    %376 = vmatpush1.xpose.msra.mxu0 0.0
    %377 = vmatprep.subr.mxu0 0.0
    %378 = vmatpush1.xpose.msra.mxu0 0.0
    %379 = vmatprep.subr.mxu0 0.0
    %380 = vmatpush1.xpose.msra.mxu0 0.0
    %381 = vmatprep.subr.mxu0 0.0
    %382 = vmatpush1.xpose.msra.mxu0 0.0
    %383 = vmatprep.subr.mxu0 0.0
    %384 = vmatpush1.xpose.msra.mxu0 0.0
    %385 = vmatprep.subr.mxu0 0.0
    %386 = vmatpush1.xpose.msra.mxu0 0.0
    %387 = vmatprep.subr.mxu0 0.0
    %388 = vmatpush1.xpose.msra.mxu0 0.0
    %389 = vmatprep.subr.mxu0 0.0
    %390 = vmatpush1.xpose.msra.mxu0 %v357
    %391 = vmatprep.subr.mxu0 0.0
    %392 = vmatpush2.xpose.msra.mxu0 0.0
    %393 = vmatprep.subr.mxu0 0.0
    %394 = vmatpush2.xpose.msra.mxu0 0.0
    %395 = vmatprep.subr.mxu0 0.0
    %396 = vmatpush2.xpose.msra.mxu0 0.0
    %397 = vmatprep.subr.mxu0 0.0
    %398 = vmatpush2.xpose.msra.mxu0 0.0
    %399 = vmatprep.subr.mxu0 0.0
    %400 = vmatpush2.xpose.msra.mxu0 0.0
    %401 = vmatprep.subr.mxu0 0.0
    %402 = vmatpush2.xpose.msra.mxu0 0.0
    %403 = vmatprep.subr.mxu0 0.0
    %404 = vmatpush2.xpose.msra.mxu0 0.0
    %405 = vmatprep.subr.mxu0 0.0
    %406 = vmatpush2.xpose.msra.mxu0 0.0
    %407 = vmatprep.subr.mxu0 0.0
    %408 = vmatpush2.xpose.msra.mxu0 0.0
    %409 = vmatprep.subr.mxu0 0.0
    %410 = vmatpush2.xpose.msra.mxu0 0.0
    %411 = vmatprep.subr.mxu0 0.0
    %412 = vmatpush2.xpose.msra.mxu0 0.0
    %413 = vmatprep.subr.mxu0 0.0
    %414 = vmatpush2.xpose.msra.mxu0 0.0
    %415 = vmatprep.subr.mxu0 0.0
    %416 = vmatpush2.xpose.msra.mxu0 0.0
    %417 = vmatprep.subr.mxu0 0.0
    %418 = vmatpush2.xpose.msra.mxu0 0.0
    %419 = vmatprep.subr.mxu0 0.0
    %420 = vmatpush2.xpose.msra.mxu0 0.0
    %421 = vmatprep.subr.mxu0 0.0
    %422 = vmatpush2.xpose.msra.mxu0 0.0
    %423 = vmatprep.mubr.f32.mxu0 0.0
    %424 = vmatmul.mubr.f32.gmra.mxu0 %v354
    %v425 = vpop.f32.mrf.mxu0
    %v426 = vadd.f32 0.0, %v425
    %v427 = vpop.f32.mrf.mxu0
    %428 = vdwg.mxu0
    %v430 = vsel %vm352, %v161, 0
    %v433 = vsel %vm352, %v257, 0
    %435 = vmatprep.subr.mxu0 0.0
    %436 = vmatpush1.xpose.msra.mxu0 0.0
    %437 = vmatprep.subr.mxu0 0.0
    %438 = vmatpush1.xpose.msra.mxu0 0.0
    %439 = vmatprep.subr.mxu0 0.0
    %440 = vmatpush1.xpose.msra.mxu0 0.0
    %441 = vmatprep.subr.mxu0 0.0
    %442 = vmatpush1.xpose.msra.mxu0 0.0
    %443 = vmatprep.subr.mxu0 0.0
    %444 = vmatpush1.xpose.msra.mxu0 0.0
    %445 = vmatprep.subr.mxu0 0.0
    %446 = vmatpush1.xpose.msra.mxu0 0.0
    %447 = vmatprep.subr.mxu0 0.0
    %448 = vmatpush1.xpose.msra.mxu0 0.0
    %449 = vmatprep.subr.mxu0 0.0
    %450 = vmatpush1.xpose.msra.mxu0 0.0
    %451 = vmatprep.subr.mxu0 0.0
    %452 = vmatpush1.xpose.msra.mxu0 0.0
    %453 = vmatprep.subr.mxu0 0.0
    %454 = vmatpush1.xpose.msra.mxu0 0.0
    %455 = vmatprep.subr.mxu0 0.0
    %456 = vmatpush1.xpose.msra.mxu0 0.0
    %457 = vmatprep.subr.mxu0 0.0
    %458 = vmatpush1.xpose.msra.mxu0 0.0
    %459 = vmatprep.subr.mxu0 0.0
    %460 = vmatpush1.xpose.msra.mxu0 0.0
    %461 = vmatprep.subr.mxu0 0.0
    %462 = vmatpush1.xpose.msra.mxu0 0.0
    %463 = vmatprep.subr.mxu0 0.0
    %464 = vmatpush1.xpose.msra.mxu0 0.0
    %465 = vmatprep.subr.mxu0 0.0
    %466 = vmatpush1.xpose.msra.mxu0 %v433
    %467 = vmatprep.subr.mxu0 0.0
    %468 = vmatpush2.xpose.msra.mxu0 0.0
    %469 = vmatprep.subr.mxu0 0.0
    %470 = vmatpush2.xpose.msra.mxu0 0.0
    %471 = vmatprep.subr.mxu0 0.0
    %472 = vmatpush2.xpose.msra.mxu0 0.0
    %473 = vmatprep.subr.mxu0 0.0
    %474 = vmatpush2.xpose.msra.mxu0 0.0
    %475 = vmatprep.subr.mxu0 0.0
    %476 = vmatpush2.xpose.msra.mxu0 0.0
    %477 = vmatprep.subr.mxu0 0.0
    %478 = vmatpush2.xpose.msra.mxu0 0.0
    %479 = vmatprep.subr.mxu0 0.0
    %480 = vmatpush2.xpose.msra.mxu0 0.0
    %481 = vmatprep.subr.mxu0 0.0
    %482 = vmatpush2.xpose.msra.mxu0 0.0
    %483 = vmatprep.subr.mxu0 0.0
    %484 = vmatpush2.xpose.msra.mxu0 0.0
    %485 = vmatprep.subr.mxu0 0.0
    %486 = vmatpush2.xpose.msra.mxu0 0.0
    %487 = vmatprep.subr.mxu0 0.0
    %488 = vmatpush2.xpose.msra.mxu0 0.0
    %489 = vmatprep.subr.mxu0 0.0
    %490 = vmatpush2.xpose.msra.mxu0 0.0
    %491 = vmatprep.subr.mxu0 0.0
    %492 = vmatpush2.xpose.msra.mxu0 0.0
    %493 = vmatprep.subr.mxu0 0.0
    %494 = vmatpush2.xpose.msra.mxu0 0.0
    %495 = vmatprep.subr.mxu0 0.0
    %496 = vmatpush2.xpose.msra.mxu0 0.0
    %497 = vmatprep.subr.mxu0 0.0
    %498 = vmatpush2.xpose.msra.mxu0 0.0
    %499 = vmatprep.mubr.f32.mxu0 0.0
    %500 = vmatmul.mubr.f32.gmra.mxu0 %v430
    %v501 = vpop.f32.mrf.mxu0
    %v502 = vadd.f32 0.0, %v501
    %v503 = vpop.f32.mrf.mxu0
    %504 = vdwg.mxu0
    %v505 = vmul.f32 %v426, 0.25
    %v506 = vmul.f32 %v502, 0.25
    %vm507 = vcmask 64512
    %v508 = vsel %vm507, %v505, -inf
    %509 = vmax.xlane.f32.xlu0 %v508
    %v510 = vpop.xlane.xlu0 %509
    %v511 = vsel %vm507, %v506, -inf
    %512 = vmax.xlane.f32.xlu0 %v511
    %v513 = vpop.xlane.xlu0 %512
    %v514 = vsub.f32 %v505, %v510
    %v515 = vsub.f32 %v506, %v513
    %v516 = vmul.f32 %v514, 1.442695
    %v517 = vpow.pop %v516
    %v518 = vmul.f32 %v515, 1.442695
    %v519 = vpow.pop %v518
    %v520 = vsel %vm507, %v517, 0.0
    %521 = vadd.xlane.f32.xlu0 %v520
    %v522 = vpop.xlane.xlu0 %521
    %v523 = vsel %vm507, %v519, 0.0
    %524 = vadd.xlane.f32.xlu0 %v523
    %v525 = vpop.xlane.xlu0 %524
    %v526 = vrcp.pop %v522
    %v527 = vrcp.pop %v525
    %v528 = vmul.f32 %v517, %v526
    %v529 = vmul.f32 %v519, %v527
    %v531 = vsel %vm507, %v528, 0
    %533 = vmatprep.subr.mxu0 0.0
    %534 = vmatpush1.msra.mxu0 0.0
    %535 = vmatprep.subr.mxu0 0.0
    %536 = vmatpush1.msra.mxu0 0.0
    %537 = vmatprep.subr.mxu0 0.0
    %538 = vmatpush1.msra.mxu0 0.0
    %539 = vmatprep.subr.mxu0 0.0
    %540 = vmatpush1.msra.mxu0 0.0
    %541 = vmatprep.subr.mxu0 0.0
    %542 = vmatpush1.msra.mxu0 0.0
    %543 = vmatprep.subr.mxu0 0.0
    %544 = vmatpush1.msra.mxu0 0.0
    %545 = vmatprep.subr.mxu0 0.0
    %546 = vmatpush1.msra.mxu0 0.0
    %547 = vmatprep.subr.mxu0 0.0
    %548 = vmatpush1.msra.mxu0 0.0
    %549 = vmatprep.subr.mxu0 0.0
    %550 = vmatpush1.msra.mxu0 0.0
    %551 = vmatprep.subr.mxu0 0.0
    %552 = vmatpush1.msra.mxu0 0.0
    %553 = vmatprep.subr.mxu0 0.0
    %554 = vmatpush1.msra.mxu0 0.0
    %555 = vmatprep.subr.mxu0 0.0
    %556 = vmatpush1.msra.mxu0 0.0
    %557 = vmatprep.subr.mxu0 0.0
    %558 = vmatpush1.msra.mxu0 0.0
    %559 = vmatprep.subr.mxu0 0.0
    %560 = vmatpush1.msra.mxu0 0.0
    %561 = vmatprep.subr.mxu0 0.0
    %562 = vmatpush1.msra.mxu0 0.0
    %563 = vmatprep.subr.mxu0 0.0
    %564 = vmatpush1.msra.mxu0 %v344
    %565 = vmatprep.subr.mxu0 0.0
    %566 = vmatpush2.msra.mxu0 0.0
    %567 = vmatprep.subr.mxu0 0.0
    %568 = vmatpush2.msra.mxu0 0.0
    %569 = vmatprep.subr.mxu0 0.0
    %570 = vmatpush2.msra.mxu0 0.0
    %571 = vmatprep.subr.mxu0 0.0
    %572 = vmatpush2.msra.mxu0 0.0
    %573 = vmatprep.subr.mxu0 0.0
    %574 = vmatpush2.msra.mxu0 0.0
    %575 = vmatprep.subr.mxu0 0.0
    %576 = vmatpush2.msra.mxu0 0.0
    %577 = vmatprep.subr.mxu0 0.0
    %578 = vmatpush2.msra.mxu0 0.0
    %579 = vmatprep.subr.mxu0 0.0
    %580 = vmatpush2.msra.mxu0 0.0
    %581 = vmatprep.subr.mxu0 0.0
    %582 = vmatpush2.msra.mxu0 0.0
    %583 = vmatprep.subr.mxu0 0.0
    %584 = vmatpush2.msra.mxu0 0.0
    %585 = vmatprep.subr.mxu0 0.0
    %586 = vmatpush2.msra.mxu0 0.0
    %587 = vmatprep.subr.mxu0 0.0
    %588 = vmatpush2.msra.mxu0 0.0
    %589 = vmatprep.subr.mxu0 0.0
    %590 = vmatpush2.msra.mxu0 0.0
    %591 = vmatprep.subr.mxu0 0.0
    %592 = vmatpush2.msra.mxu0 0.0
    %593 = vmatprep.subr.mxu0 0.0
    %594 = vmatpush2.msra.mxu0 0.0
    %595 = vmatprep.subr.mxu0 0.0
    %596 = vmatpush2.msra.mxu0 0.0
    %597 = vmatprep.mubr.f32.mxu0 0.0
    %598 = vmatmul.mubr.f32.gmra.mxu0 %v531
    %v599 = vpop.f32.mrf.mxu0
    %v600 = vadd.f32 0.0, %v599
    %v601 = vpop.f32.mrf.mxu0
    %602 = vdwg.mxu0
    %v604 = vsel %vm507, %v529, 0
    %606 = vmatprep.subr.mxu0 0.0
    %607 = vmatpush1.msra.mxu0 0.0
    %608 = vmatprep.subr.mxu0 0.0
    %609 = vmatpush1.msra.mxu0 0.0
    %610 = vmatprep.subr.mxu0 0.0
    %611 = vmatpush1.msra.mxu0 0.0
    %612 = vmatprep.subr.mxu0 0.0
    %613 = vmatpush1.msra.mxu0 0.0
    %614 = vmatprep.subr.mxu0 0.0
    %615 = vmatpush1.msra.mxu0 0.0
    %616 = vmatprep.subr.mxu0 0.0
    %617 = vmatpush1.msra.mxu0 0.0
    %618 = vmatprep.subr.mxu0 0.0
    %619 = vmatpush1.msra.mxu0 0.0
    %620 = vmatprep.subr.mxu0 0.0
    %621 = vmatpush1.msra.mxu0 0.0
    %622 = vmatprep.subr.mxu0 0.0
    %623 = vmatpush1.msra.mxu0 0.0
    %624 = vmatprep.subr.mxu0 0.0
    %625 = vmatpush1.msra.mxu0 0.0
    %626 = vmatprep.subr.mxu0 0.0
    %627 = vmatpush1.msra.mxu0 0.0
    %628 = vmatprep.subr.mxu0 0.0
    %629 = vmatpush1.msra.mxu0 0.0
    %630 = vmatprep.subr.mxu0 0.0
    %631 = vmatpush1.msra.mxu0 0.0
    %632 = vmatprep.subr.mxu0 0.0
    %633 = vmatpush1.msra.mxu0 0.0
    %634 = vmatprep.subr.mxu0 0.0
    %635 = vmatpush1.msra.mxu0 0.0
    %636 = vmatprep.subr.mxu0 0.0
    %637 = vmatpush1.msra.mxu0 %v349
    %638 = vmatprep.subr.mxu0 0.0
    %639 = vmatpush2.msra.mxu0 0.0
    %640 = vmatprep.subr.mxu0 0.0
    %641 = vmatpush2.msra.mxu0 0.0
    %642 = vmatprep.subr.mxu0 0.0
    %643 = vmatpush2.msra.mxu0 0.0
    %644 = vmatprep.subr.mxu0 0.0
    %645 = vmatpush2.msra.mxu0 0.0
    %646 = vmatprep.subr.mxu0 0.0
    %647 = vmatpush2.msra.mxu0 0.0
    %648 = vmatprep.subr.mxu0 0.0
    %649 = vmatpush2.msra.mxu0 0.0
    %650 = vmatprep.subr.mxu0 0.0
    %651 = vmatpush2.msra.mxu0 0.0
    %652 = vmatprep.subr.mxu0 0.0
    %653 = vmatpush2.msra.mxu0 0.0
    %654 = vmatprep.subr.mxu0 0.0
    %655 = vmatpush2.msra.mxu0 0.0
    %656 = vmatprep.subr.mxu0 0.0
    %657 = vmatpush2.msra.mxu0 0.0
    %658 = vmatprep.subr.mxu0 0.0
    %659 = vmatpush2.msra.mxu0 0.0
    %660 = vmatprep.subr.mxu0 0.0
    %661 = vmatpush2.msra.mxu0 0.0
    %662 = vmatprep.subr.mxu0 0.0
    %663 = vmatpush2.msra.mxu0 0.0
    %664 = vmatprep.subr.mxu0 0.0
    %665 = vmatpush2.msra.mxu0 0.0
    %666 = vmatprep.subr.mxu0 0.0
    %667 = vmatpush2.msra.mxu0 0.0
    %668 = vmatprep.subr.mxu0 0.0
    %669 = vmatpush2.msra.mxu0 0.0
    %670 = vmatprep.mubr.f32.mxu0 0.0
    %671 = vmatmul.mubr.f32.gmra.mxu0 %v604
    %v672 = vpop.f32.mrf.mxu0
    %v673 = vadd.f32 0.0, %v672
    %v674 = vpop.f32.mrf.mxu0
    %675 = vdwg.mxu0
    %v676 = vld [vmem:[#allocation5] sm:$0xff]
    %v677 = vld [vmem:[#allocation5 + $0x8] sm:$0xff]
    %v678 = vld [vmem:[#allocation5] sm:$0xff]
    %v679 = vld [vmem:[#allocation5 + $0x8] sm:$0xff]
    %v680 = vld [vmem:[#allocation5 + $0x10] sm:$0xff]
    %v681 = vld [vmem:[#allocation5 + $0x18] sm:$0xff]
    %v682 = vld [vmem:[#allocation8] sm:$0x1]
    %v683 = vlaneseq
    %v684 = vshrl.u32 %v683, 7
    %v685 = vsub.s32 0, %v684
    %v686 = vrot.slane %v682, %v685
    %691 = vrot.lane.b32.xlu0 %v678, 112
    %v692 = vpop.permute.xlu0 %691
    %693 = vrot.lane.b32.xlu0 %v679, 112
    %v694 = vpop.permute.xlu0 %693
    %695 = vrot.lane.b32.xlu0 %v680, 112
    %v696 = vpop.permute.xlu0 %695
    %697 = vrot.lane.b32.xlu0 %v681, 112
    %v698 = vpop.permute.xlu0 %697
    %704 = vrot.lane.b32.xlu0 %v686, 112
    %v705 = vpop.permute.xlu0 %704
    %707 = vmatprep.subr.mxu0 0.0
    %708 = vmatpush1.msra.mxu0 0.0
    %709 = vmatprep.subr.mxu0 0.0
    %710 = vmatpush1.msra.mxu0 0.0
    %711 = vmatprep.subr.mxu0 0.0
    %712 = vmatpush1.msra.mxu0 0.0
    %713 = vmatprep.subr.mxu0 0.0
    %714 = vmatpush1.msra.mxu0 0.0
    %715 = vmatprep.subr.mxu0 0.0
    %716 = vmatpush1.msra.mxu0 0.0
    %717 = vmatprep.subr.mxu0 0.0
    %718 = vmatpush1.msra.mxu0 0.0
    %719 = vmatprep.subr.mxu0 0.0
    %720 = vmatpush1.msra.mxu0 0.0
    %721 = vmatprep.subr.mxu0 0.0
    %722 = vmatpush1.msra.mxu0 0.0
    %723 = vmatprep.subr.mxu0 0.0
    %724 = vmatpush1.msra.mxu0 0.0
    %725 = vmatprep.subr.mxu0 0.0
    %726 = vmatpush1.msra.mxu0 0.0
    %727 = vmatprep.subr.mxu0 0.0
    %728 = vmatpush1.msra.mxu0 0.0
    %729 = vmatprep.subr.mxu0 0.0
    %730 = vmatpush1.msra.mxu0 0.0
    %731 = vmatprep.subr.mxu0 0.0
    %732 = vmatpush1.msra.mxu0 %v698
    %733 = vmatprep.subr.mxu0 0.0
    %734 = vmatpush1.msra.mxu0 %v696
    %735 = vmatprep.subr.mxu0 0.0
    %736 = vmatpush1.msra.mxu0 %v694
    %737 = vmatprep.subr.mxu0 0.0
    %738 = vmatpush1.msra.mxu0 %v692
    %739 = vmatprep.subr.mxu0 0.0
    %740 = vmatpush2.msra.mxu0 0.0
    %741 = vmatprep.subr.mxu0 0.0
    %742 = vmatpush2.msra.mxu0 0.0
    %743 = vmatprep.subr.mxu0 0.0
    %744 = vmatpush2.msra.mxu0 0.0
    %745 = vmatprep.subr.mxu0 0.0
    %746 = vmatpush2.msra.mxu0 0.0
    %747 = vmatprep.subr.mxu0 0.0
    %748 = vmatpush2.msra.mxu0 0.0
    %749 = vmatprep.subr.mxu0 0.0
    %750 = vmatpush2.msra.mxu0 0.0
    %751 = vmatprep.subr.mxu0 0.0
    %752 = vmatpush2.msra.mxu0 0.0
    %753 = vmatprep.subr.mxu0 0.0
    %754 = vmatpush2.msra.mxu0 0.0
    %755 = vmatprep.subr.mxu0 0.0
    %756 = vmatpush2.msra.mxu0 0.0
    %757 = vmatprep.subr.mxu0 0.0
    %758 = vmatpush2.msra.mxu0 0.0
    %759 = vmatprep.subr.mxu0 0.0
    %760 = vmatpush2.msra.mxu0 0.0
    %761 = vmatprep.subr.mxu0 0.0
    %762 = vmatpush2.msra.mxu0 0.0
    %763 = vmatprep.subr.mxu0 0.0
    %764 = vmatpush2.msra.mxu0 0.0
    %765 = vmatprep.subr.mxu0 0.0
    %766 = vmatpush2.msra.mxu0 0.0
    %767 = vmatprep.subr.mxu0 0.0
    %768 = vmatpush2.msra.mxu0 0.0
    %769 = vmatprep.subr.mxu0 0.0
    %770 = vmatpush2.msra.mxu0 0.0
    %771 = vmatprep.mubr.f32.mxu0 0.0
    %772 = vmatmul.mubr.f32.gmra.mxu0 %v84
    %v773 = vpop.f32.mrf.mxu0
    %v774 = vadd.f32 %v705, %v773
    %v775 = vpop.f32.mrf.mxu0
    %776 = vmatprep.mubr.f32.mxu0 0.0
    %777 = vmatmul.mubr.f32.gmra.mxu0 %v87
    %v778 = vpop.f32.mrf.mxu0
    %v779 = vadd.f32 %v705, %v778
    %v780 = vpop.f32.mrf.mxu0
    %781 = vdwg.mxu0
    %v782 = vld [vmem:[#allocation8 + $0x1] sm:$0x1]
    %v783 = vlaneseq
    %v784 = vshrl.u32 %v783, 7
    %v785 = vsub.s32 0, %v784
    %v786 = vrot.slane %v782, %v785
    %787 = vrot.lane.b32.xlu0 %v678, 80
    %v788 = vpop.permute.xlu0 %787
    %789 = vrot.lane.b32.xlu0 %v679, 80
    %v790 = vpop.permute.xlu0 %789
    %791 = vrot.lane.b32.xlu0 %v680, 80
    %v792 = vpop.permute.xlu0 %791
    %793 = vrot.lane.b32.xlu0 %v681, 80
    %v794 = vpop.permute.xlu0 %793
    %800 = vrot.lane.b32.xlu0 %v786, 112
    %v801 = vpop.permute.xlu0 %800
    %803 = vmatprep.subr.mxu0 0.0
    %804 = vmatpush1.msra.mxu0 0.0
    %805 = vmatprep.subr.mxu0 0.0
    %806 = vmatpush1.msra.mxu0 0.0
    %807 = vmatprep.subr.mxu0 0.0
    %808 = vmatpush1.msra.mxu0 0.0
    %809 = vmatprep.subr.mxu0 0.0
    %810 = vmatpush1.msra.mxu0 0.0
    %811 = vmatprep.subr.mxu0 0.0
    %812 = vmatpush1.msra.mxu0 0.0
    %813 = vmatprep.subr.mxu0 0.0
    %814 = vmatpush1.msra.mxu0 0.0
    %815 = vmatprep.subr.mxu0 0.0
    %816 = vmatpush1.msra.mxu0 0.0
    %817 = vmatprep.subr.mxu0 0.0
    %818 = vmatpush1.msra.mxu0 0.0
    %819 = vmatprep.subr.mxu0 0.0
    %820 = vmatpush1.msra.mxu0 0.0
    %821 = vmatprep.subr.mxu0 0.0
    %822 = vmatpush1.msra.mxu0 0.0
    %823 = vmatprep.subr.mxu0 0.0
    %824 = vmatpush1.msra.mxu0 0.0
    %825 = vmatprep.subr.mxu0 0.0
    %826 = vmatpush1.msra.mxu0 0.0
    %827 = vmatprep.subr.mxu0 0.0
    %828 = vmatpush1.msra.mxu0 %v794
    %829 = vmatprep.subr.mxu0 0.0
    %830 = vmatpush1.msra.mxu0 %v792
    %831 = vmatprep.subr.mxu0 0.0
    %832 = vmatpush1.msra.mxu0 %v790
    %833 = vmatprep.subr.mxu0 0.0
    %834 = vmatpush1.msra.mxu0 %v788
    %835 = vmatprep.subr.mxu0 0.0
    %836 = vmatpush2.msra.mxu0 0.0
    %837 = vmatprep.subr.mxu0 0.0
    %838 = vmatpush2.msra.mxu0 0.0
    %839 = vmatprep.subr.mxu0 0.0
    %840 = vmatpush2.msra.mxu0 0.0
    %841 = vmatprep.subr.mxu0 0.0
    %842 = vmatpush2.msra.mxu0 0.0
    %843 = vmatprep.subr.mxu0 0.0
    %844 = vmatpush2.msra.mxu0 0.0
    %845 = vmatprep.subr.mxu0 0.0
    %846 = vmatpush2.msra.mxu0 0.0
    %847 = vmatprep.subr.mxu0 0.0
    %848 = vmatpush2.msra.mxu0 0.0
    %849 = vmatprep.subr.mxu0 0.0
    %850 = vmatpush2.msra.mxu0 0.0
    %851 = vmatprep.subr.mxu0 0.0
    %852 = vmatpush2.msra.mxu0 0.0
    %853 = vmatprep.subr.mxu0 0.0
    %854 = vmatpush2.msra.mxu0 0.0
    %855 = vmatprep.subr.mxu0 0.0
    %856 = vmatpush2.msra.mxu0 0.0
    %857 = vmatprep.subr.mxu0 0.0
    %858 = vmatpush2.msra.mxu0 0.0
    %859 = vmatprep.subr.mxu0 0.0
    %860 = vmatpush2.msra.mxu0 0.0
    %861 = vmatprep.subr.mxu0 0.0
    %862 = vmatpush2.msra.mxu0 0.0
    %863 = vmatprep.subr.mxu0 0.0
    %864 = vmatpush2.msra.mxu0 0.0
    %865 = vmatprep.subr.mxu0 0.0
    %866 = vmatpush2.msra.mxu0 0.0
    %867 = vmatprep.mubr.f32.mxu0 0.0
    %868 = vmatmul.mubr.f32.gmra.mxu0 %v84
    %v869 = vpop.f32.mrf.mxu0
    %v870 = vadd.f32 %v801, %v869
    %v871 = vpop.f32.mrf.mxu0
    %872 = vmatprep.mubr.f32.mxu0 0.0
    %873 = vmatmul.mubr.f32.gmra.mxu0 %v87
    %v874 = vpop.f32.mrf.mxu0
    %v875 = vadd.f32 %v801, %v874
    %v876 = vpop.f32.mrf.mxu0
    %877 = vdwg.mxu0
    %v878 = vld [vmem:[#allocation8 + $0x2] sm:$0x1]
    %v879 = vlaneseq
    %v880 = vshrl.u32 %v879, 7
    %v881 = vsub.s32 0, %v880
    %v882 = vrot.slane %v878, %v881
    %883 = vrot.lane.b32.xlu0 %v678, 48
    %v884 = vpop.permute.xlu0 %883
    %885 = vrot.lane.b32.xlu0 %v679, 48
    %v886 = vpop.permute.xlu0 %885
    %887 = vrot.lane.b32.xlu0 %v680, 48
    %v888 = vpop.permute.xlu0 %887
    %889 = vrot.lane.b32.xlu0 %v681, 48
    %v890 = vpop.permute.xlu0 %889
    %896 = vrot.lane.b32.xlu0 %v882, 112
    %v897 = vpop.permute.xlu0 %896
    %899 = vmatprep.subr.mxu0 0.0
    %900 = vmatpush1.msra.mxu0 0.0
    %901 = vmatprep.subr.mxu0 0.0
    %902 = vmatpush1.msra.mxu0 0.0
    %903 = vmatprep.subr.mxu0 0.0
    %904 = vmatpush1.msra.mxu0 0.0
    %905 = vmatprep.subr.mxu0 0.0
    %906 = vmatpush1.msra.mxu0 0.0
    %907 = vmatprep.subr.mxu0 0.0
    %908 = vmatpush1.msra.mxu0 0.0
    %909 = vmatprep.subr.mxu0 0.0
    %910 = vmatpush1.msra.mxu0 0.0
    %911 = vmatprep.subr.mxu0 0.0
    %912 = vmatpush1.msra.mxu0 0.0
    %913 = vmatprep.subr.mxu0 0.0
    %914 = vmatpush1.msra.mxu0 0.0
    %915 = vmatprep.subr.mxu0 0.0
    %916 = vmatpush1.msra.mxu0 0.0
    %917 = vmatprep.subr.mxu0 0.0
    %918 = vmatpush1.msra.mxu0 0.0
    %919 = vmatprep.subr.mxu0 0.0
    %920 = vmatpush1.msra.mxu0 0.0
    %921 = vmatprep.subr.mxu0 0.0
    %922 = vmatpush1.msra.mxu0 0.0
    %923 = vmatprep.subr.mxu0 0.0
    %924 = vmatpush1.msra.mxu0 %v890
    %925 = vmatprep.subr.mxu0 0.0
    %926 = vmatpush1.msra.mxu0 %v888
    %927 = vmatprep.subr.mxu0 0.0
    %928 = vmatpush1.msra.mxu0 %v886
    %929 = vmatprep.subr.mxu0 0.0
    %930 = vmatpush1.msra.mxu0 %v884
    %931 = vmatprep.subr.mxu0 0.0
    %932 = vmatpush2.msra.mxu0 0.0
    %933 = vmatprep.subr.mxu0 0.0
    %934 = vmatpush2.msra.mxu0 0.0
    %935 = vmatprep.subr.mxu0 0.0
    %936 = vmatpush2.msra.mxu0 0.0
    %937 = vmatprep.subr.mxu0 0.0
    %938 = vmatpush2.msra.mxu0 0.0
    %939 = vmatprep.subr.mxu0 0.0
    %940 = vmatpush2.msra.mxu0 0.0
    %941 = vmatprep.subr.mxu0 0.0
    %942 = vmatpush2.msra.mxu0 0.0
    %943 = vmatprep.subr.mxu0 0.0
    %944 = vmatpush2.msra.mxu0 0.0
    %945 = vmatprep.subr.mxu0 0.0
    %946 = vmatpush2.msra.mxu0 0.0
    %947 = vmatprep.subr.mxu0 0.0
    %948 = vmatpush2.msra.mxu0 0.0
    %949 = vmatprep.subr.mxu0 0.0
    %950 = vmatpush2.msra.mxu0 0.0
    %951 = vmatprep.subr.mxu0 0.0
    %952 = vmatpush2.msra.mxu0 0.0
    %953 = vmatprep.subr.mxu0 0.0
    %954 = vmatpush2.msra.mxu0 0.0
    %955 = vmatprep.subr.mxu0 0.0
    %956 = vmatpush2.msra.mxu0 0.0
    %957 = vmatprep.subr.mxu0 0.0
    %958 = vmatpush2.msra.mxu0 0.0
    %959 = vmatprep.subr.mxu0 0.0
    %960 = vmatpush2.msra.mxu0 0.0
    %961 = vmatprep.subr.mxu0 0.0
    %962 = vmatpush2.msra.mxu0 0.0
    %963 = vmatprep.mubr.f32.mxu0 0.0
    %964 = vmatmul.mubr.f32.gmra.mxu0 %v84
    %v965 = vpop.f32.mrf.mxu0
    %v966 = vadd.f32 %v897, %v965
    %v967 = vpop.f32.mrf.mxu0
    %968 = vmatprep.mubr.f32.mxu0 0.0
    %969 = vmatmul.mubr.f32.gmra.mxu0 %v87
    %v970 = vpop.f32.mrf.mxu0
    %v971 = vadd.f32 %v897, %v970
    %v972 = vpop.f32.mrf.mxu0
    %973 = vdwg.mxu0
    %v975 = vsel %vm352, %v774, 0
    %v978 = vsel %vm352, %v870, 0
    %980 = vmatprep.subr.mxu0 0.0
    %981 = vmatpush1.xpose.msra.mxu0 0.0
    %982 = vmatprep.subr.mxu0 0.0
    %983 = vmatpush1.xpose.msra.mxu0 0.0
    %984 = vmatprep.subr.mxu0 0.0
    %985 = vmatpush1.xpose.msra.mxu0 0.0
    %986 = vmatprep.subr.mxu0 0.0
    %987 = vmatpush1.xpose.msra.mxu0 0.0
    %988 = vmatprep.subr.mxu0 0.0
    %989 = vmatpush1.xpose.msra.mxu0 0.0
    %990 = vmatprep.subr.mxu0 0.0
    %991 = vmatpush1.xpose.msra.mxu0 0.0
    %992 = vmatprep.subr.mxu0 0.0
    %993 = vmatpush1.xpose.msra.mxu0 0.0
    %994 = vmatprep.subr.mxu0 0.0
    %995 = vmatpush1.xpose.msra.mxu0 0.0
    %996 = vmatprep.subr.mxu0 0.0
    %997 = vmatpush1.xpose.msra.mxu0 0.0
    %998 = vmatprep.subr.mxu0 0.0
    %999 = vmatpush1.xpose.msra.mxu0 0.0
    %1000 = vmatprep.subr.mxu0 0.0
    %1001 = vmatpush1.xpose.msra.mxu0 0.0
    %1002 = vmatprep.subr.mxu0 0.0
    %1003 = vmatpush1.xpose.msra.mxu0 0.0
    %1004 = vmatprep.subr.mxu0 0.0
    %1005 = vmatpush1.xpose.msra.mxu0 0.0
    %1006 = vmatprep.subr.mxu0 0.0
    %1007 = vmatpush1.xpose.msra.mxu0 0.0
    %1008 = vmatprep.subr.mxu0 0.0
    %1009 = vmatpush1.xpose.msra.mxu0 0.0
    %1010 = vmatprep.subr.mxu0 0.0
    %1011 = vmatpush1.xpose.msra.mxu0 %v978
    %1012 = vmatprep.subr.mxu0 0.0
    %1013 = vmatpush2.xpose.msra.mxu0 0.0
    %1014 = vmatprep.subr.mxu0 0.0
    %1015 = vmatpush2.xpose.msra.mxu0 0.0
    %1016 = vmatprep.subr.mxu0 0.0
    %1017 = vmatpush2.xpose.msra.mxu0 0.0
    %1018 = vmatprep.subr.mxu0 0.0
    %1019 = vmatpush2.xpose.msra.mxu0 0.0
    %1020 = vmatprep.subr.mxu0 0.0
    %1021 = vmatpush2.xpose.msra.mxu0 0.0
    %1022 = vmatprep.subr.mxu0 0.0
    %1023 = vmatpush2.xpose.msra.mxu0 0.0
    %1024 = vmatprep.subr.mxu0 0.0
    %1025 = vmatpush2.xpose.msra.mxu0 0.0
    %1026 = vmatprep.subr.mxu0 0.0
    %1027 = vmatpush2.xpose.msra.mxu0 0.0
    %1028 = vmatprep.subr.mxu0 0.0
    %1029 = vmatpush2.xpose.msra.mxu0 0.0
    %1030 = vmatprep.subr.mxu0 0.0
    %1031 = vmatpush2.xpose.msra.mxu0 0.0
    %1032 = vmatprep.subr.mxu0 0.0
    %1033 = vmatpush2.xpose.msra.mxu0 0.0
    %1034 = vmatprep.subr.mxu0 0.0
    %1035 = vmatpush2.xpose.msra.mxu0 0.0
    %1036 = vmatprep.subr.mxu0 0.0
    %1037 = vmatpush2.xpose.msra.mxu0 0.0
    %1038 = vmatprep.subr.mxu0 0.0
    %1039 = vmatpush2.xpose.msra.mxu0 0.0
    %1040 = vmatprep.subr.mxu0 0.0
    %1041 = vmatpush2.xpose.msra.mxu0 0.0
    %1042 = vmatprep.subr.mxu0 0.0
    %1043 = vmatpush2.xpose.msra.mxu0 0.0
    %1044 = vmatprep.mubr.f32.mxu0 0.0
    %1045 = vmatmul.mubr.f32.gmra.mxu0 %v975
    %v1046 = vpop.f32.mrf.mxu0
    %v1047 = vadd.f32 0.0, %v1046
    %v1048 = vpop.f32.mrf.mxu0
    %1049 = vdwg.mxu0
    %v1051 = vsel %vm352, %v779, 0
    %v1054 = vsel %vm352, %v875, 0
    %1056 = vmatprep.subr.mxu0 0.0
    %1057 = vmatpush1.xpose.msra.mxu0 0.0
    %1058 = vmatprep.subr.mxu0 0.0
    %1059 = vmatpush1.xpose.msra.mxu0 0.0
    %1060 = vmatprep.subr.mxu0 0.0
    %1061 = vmatpush1.xpose.msra.mxu0 0.0
    %1062 = vmatprep.subr.mxu0 0.0
    %1063 = vmatpush1.xpose.msra.mxu0 0.0
    %1064 = vmatprep.subr.mxu0 0.0
    %1065 = vmatpush1.xpose.msra.mxu0 0.0
    %1066 = vmatprep.subr.mxu0 0.0
    %1067 = vmatpush1.xpose.msra.mxu0 0.0
    %1068 = vmatprep.subr.mxu0 0.0
    %1069 = vmatpush1.xpose.msra.mxu0 0.0
    %1070 = vmatprep.subr.mxu0 0.0
    %1071 = vmatpush1.xpose.msra.mxu0 0.0
    %1072 = vmatprep.subr.mxu0 0.0
    %1073 = vmatpush1.xpose.msra.mxu0 0.0
    %1074 = vmatprep.subr.mxu0 0.0
    %1075 = vmatpush1.xpose.msra.mxu0 0.0
    %1076 = vmatprep.subr.mxu0 0.0
    %1077 = vmatpush1.xpose.msra.mxu0 0.0
    %1078 = vmatprep.subr.mxu0 0.0
    %1079 = vmatpush1.xpose.msra.mxu0 0.0
    %1080 = vmatprep.subr.mxu0 0.0
    %1081 = vmatpush1.xpose.msra.mxu0 0.0
    %1082 = vmatprep.subr.mxu0 0.0
    %1083 = vmatpush1.xpose.msra.mxu0 0.0
    %1084 = vmatprep.subr.mxu0 0.0
    %1085 = vmatpush1.xpose.msra.mxu0 0.0
    %1086 = vmatprep.subr.mxu0 0.0
    %1087 = vmatpush1.xpose.msra.mxu0 %v1054
    %1088 = vmatprep.subr.mxu0 0.0
    %1089 = vmatpush2.xpose.msra.mxu0 0.0
    %1090 = vmatprep.subr.mxu0 0.0
    %1091 = vmatpush2.xpose.msra.mxu0 0.0
    %1092 = vmatprep.subr.mxu0 0.0
    %1093 = vmatpush2.xpose.msra.mxu0 0.0
    %1094 = vmatprep.subr.mxu0 0.0
    %1095 = vmatpush2.xpose.msra.mxu0 0.0
    %1096 = vmatprep.subr.mxu0 0.0
    %1097 = vmatpush2.xpose.msra.mxu0 0.0
    %1098 = vmatprep.subr.mxu0 0.0
    %1099 = vmatpush2.xpose.msra.mxu0 0.0
    %1100 = vmatprep.subr.mxu0 0.0
    %1101 = vmatpush2.xpose.msra.mxu0 0.0
    %1102 = vmatprep.subr.mxu0 0.0
    %1103 = vmatpush2.xpose.msra.mxu0 0.0
    %1104 = vmatprep.subr.mxu0 0.0
    %1105 = vmatpush2.xpose.msra.mxu0 0.0
    %1106 = vmatprep.subr.mxu0 0.0
    %1107 = vmatpush2.xpose.msra.mxu0 0.0
    %1108 = vmatprep.subr.mxu0 0.0
    %1109 = vmatpush2.xpose.msra.mxu0 0.0
    %1110 = vmatprep.subr.mxu0 0.0
    %1111 = vmatpush2.xpose.msra.mxu0 0.0
    %1112 = vmatprep.subr.mxu0 0.0
    %1113 = vmatpush2.xpose.msra.mxu0 0.0
    %1114 = vmatprep.subr.mxu0 0.0
    %1115 = vmatpush2.xpose.msra.mxu0 0.0
    %1116 = vmatprep.subr.mxu0 0.0
    %1117 = vmatpush2.xpose.msra.mxu0 0.0
    %1118 = vmatprep.subr.mxu0 0.0
    %1119 = vmatpush2.xpose.msra.mxu0 0.0
    %1120 = vmatprep.mubr.f32.mxu0 0.0
    %1121 = vmatmul.mubr.f32.gmra.mxu0 %v1051
    %v1122 = vpop.f32.mrf.mxu0
    %v1123 = vadd.f32 0.0, %v1122
    %v1124 = vpop.f32.mrf.mxu0
    %1125 = vdwg.mxu0
    %v1126 = vmul.f32 %v1047, 0.25
    %v1127 = vmul.f32 %v1123, 0.25
    %v1128 = vsel %vm507, %v1126, -inf
    %1129 = vmax.xlane.f32.xlu0 %v1128
    %v1130 = vpop.xlane.xlu0 %1129
    %v1131 = vsel %vm507, %v1127, -inf
    %1132 = vmax.xlane.f32.xlu0 %v1131
    %v1133 = vpop.xlane.xlu0 %1132
    %v1134 = vsub.f32 %v1126, %v1130
    %v1135 = vsub.f32 %v1127, %v1133
    %v1136 = vmul.f32 %v1134, 1.442695
    %v1137 = vpow.pop %v1136
    %v1138 = vmul.f32 %v1135, 1.442695
    %v1139 = vpow.pop %v1138
    %v1140 = vsel %vm507, %v1137, 0.0
    %1141 = vadd.xlane.f32.xlu0 %v1140
    %v1142 = vpop.xlane.xlu0 %1141
    %v1143 = vsel %vm507, %v1139, 0.0
    %1144 = vadd.xlane.f32.xlu0 %v1143
    %v1145 = vpop.xlane.xlu0 %1144
    %v1146 = vrcp.pop %v1142
    %v1147 = vrcp.pop %v1145
    %v1148 = vmul.f32 %v1137, %v1146
    %v1149 = vmul.f32 %v1139, %v1147
    %v1151 = vsel %vm507, %v1148, 0
    %1153 = vmatprep.subr.mxu0 0.0
    %1154 = vmatpush1.msra.mxu0 0.0
    %1155 = vmatprep.subr.mxu0 0.0
    %1156 = vmatpush1.msra.mxu0 0.0
    %1157 = vmatprep.subr.mxu0 0.0
    %1158 = vmatpush1.msra.mxu0 0.0
    %1159 = vmatprep.subr.mxu0 0.0
    %1160 = vmatpush1.msra.mxu0 0.0
    %1161 = vmatprep.subr.mxu0 0.0
    %1162 = vmatpush1.msra.mxu0 0.0
    %1163 = vmatprep.subr.mxu0 0.0
    %1164 = vmatpush1.msra.mxu0 0.0
    %1165 = vmatprep.subr.mxu0 0.0
    %1166 = vmatpush1.msra.mxu0 0.0
    %1167 = vmatprep.subr.mxu0 0.0
    %1168 = vmatpush1.msra.mxu0 0.0
    %1169 = vmatprep.subr.mxu0 0.0
    %1170 = vmatpush1.msra.mxu0 0.0
    %1171 = vmatprep.subr.mxu0 0.0
    %1172 = vmatpush1.msra.mxu0 0.0
    %1173 = vmatprep.subr.mxu0 0.0
    %1174 = vmatpush1.msra.mxu0 0.0
    %1175 = vmatprep.subr.mxu0 0.0
    %1176 = vmatpush1.msra.mxu0 0.0
    %1177 = vmatprep.subr.mxu0 0.0
    %1178 = vmatpush1.msra.mxu0 0.0
    %1179 = vmatprep.subr.mxu0 0.0
    %1180 = vmatpush1.msra.mxu0 0.0
    %1181 = vmatprep.subr.mxu0 0.0
    %1182 = vmatpush1.msra.mxu0 0.0
    %1183 = vmatprep.subr.mxu0 0.0
    %1184 = vmatpush1.msra.mxu0 %v966
    %1185 = vmatprep.subr.mxu0 0.0
    %1186 = vmatpush2.msra.mxu0 0.0
    %1187 = vmatprep.subr.mxu0 0.0
    %1188 = vmatpush2.msra.mxu0 0.0
    %1189 = vmatprep.subr.mxu0 0.0
    %1190 = vmatpush2.msra.mxu0 0.0
    %1191 = vmatprep.subr.mxu0 0.0
    %1192 = vmatpush2.msra.mxu0 0.0
    %1193 = vmatprep.subr.mxu0 0.0
    %1194 = vmatpush2.msra.mxu0 0.0
    %1195 = vmatprep.subr.mxu0 0.0
    %1196 = vmatpush2.msra.mxu0 0.0
    %1197 = vmatprep.subr.mxu0 0.0
    %1198 = vmatpush2.msra.mxu0 0.0
    %1199 = vmatprep.subr.mxu0 0.0
    %1200 = vmatpush2.msra.mxu0 0.0
    %1201 = vmatprep.subr.mxu0 0.0
    %1202 = vmatpush2.msra.mxu0 0.0
    %1203 = vmatprep.subr.mxu0 0.0
    %1204 = vmatpush2.msra.mxu0 0.0
    %1205 = vmatprep.subr.mxu0 0.0
    %1206 = vmatpush2.msra.mxu0 0.0
    %1207 = vmatprep.subr.mxu0 0.0
    %1208 = vmatpush2.msra.mxu0 0.0
    %1209 = vmatprep.subr.mxu0 0.0
    %1210 = vmatpush2.msra.mxu0 0.0
    %1211 = vmatprep.subr.mxu0 0.0
    %1212 = vmatpush2.msra.mxu0 0.0
    %1213 = vmatprep.subr.mxu0 0.0
    %1214 = vmatpush2.msra.mxu0 0.0
    %1215 = vmatprep.subr.mxu0 0.0
    %1216 = vmatpush2.msra.mxu0 0.0
    %1217 = vmatprep.mubr.f32.mxu0 0.0
    %1218 = vmatmul.mubr.f32.gmra.mxu0 %v1151
    %v1219 = vpop.f32.mrf.mxu0
    %v1220 = vadd.f32 0.0, %v1219
    %v1221 = vpop.f32.mrf.mxu0
    %1222 = vdwg.mxu0
    %v1224 = vsel %vm507, %v1149, 0
    %1226 = vmatprep.subr.mxu0 0.0
    %1227 = vmatpush1.msra.mxu0 0.0
    %1228 = vmatprep.subr.mxu0 0.0
    %1229 = vmatpush1.msra.mxu0 0.0
    %1230 = vmatprep.subr.mxu0 0.0
    %1231 = vmatpush1.msra.mxu0 0.0
    %1232 = vmatprep.subr.mxu0 0.0
    %1233 = vmatpush1.msra.mxu0 0.0
    %1234 = vmatprep.subr.mxu0 0.0
    %1235 = vmatpush1.msra.mxu0 0.0
    %1236 = vmatprep.subr.mxu0 0.0
    %1237 = vmatpush1.msra.mxu0 0.0
    %1238 = vmatprep.subr.mxu0 0.0
    %1239 = vmatpush1.msra.mxu0 0.0
    %1240 = vmatprep.subr.mxu0 0.0
    %1241 = vmatpush1.msra.mxu0 0.0
    %1242 = vmatprep.subr.mxu0 0.0
    %1243 = vmatpush1.msra.mxu0 0.0
    %1244 = vmatprep.subr.mxu0 0.0
    %1245 = vmatpush1.msra.mxu0 0.0
    %1246 = vmatprep.subr.mxu0 0.0
    %1247 = vmatpush1.msra.mxu0 0.0
    %1248 = vmatprep.subr.mxu0 0.0
    %1249 = vmatpush1.msra.mxu0 0.0
    %1250 = vmatprep.subr.mxu0 0.0
    %1251 = vmatpush1.msra.mxu0 0.0
    %1252 = vmatprep.subr.mxu0 0.0
    %1253 = vmatpush1.msra.mxu0 0.0
    %1254 = vmatprep.subr.mxu0 0.0
    %1255 = vmatpush1.msra.mxu0 0.0
    %1256 = vmatprep.subr.mxu0 0.0
    %1257 = vmatpush1.msra.mxu0 %v971
    %1258 = vmatprep.subr.mxu0 0.0
    %1259 = vmatpush2.msra.mxu0 0.0
    %1260 = vmatprep.subr.mxu0 0.0
    %1261 = vmatpush2.msra.mxu0 0.0
    %1262 = vmatprep.subr.mxu0 0.0
    %1263 = vmatpush2.msra.mxu0 0.0
    %1264 = vmatprep.subr.mxu0 0.0
    %1265 = vmatpush2.msra.mxu0 0.0
    %1266 = vmatprep.subr.mxu0 0.0
    %1267 = vmatpush2.msra.mxu0 0.0
    %1268 = vmatprep.subr.mxu0 0.0
    %1269 = vmatpush2.msra.mxu0 0.0
    %1270 = vmatprep.subr.mxu0 0.0
    %1271 = vmatpush2.msra.mxu0 0.0
    %1272 = vmatprep.subr.mxu0 0.0
    %1273 = vmatpush2.msra.mxu0 0.0
    %1274 = vmatprep.subr.mxu0 0.0
    %1275 = vmatpush2.msra.mxu0 0.0
    %1276 = vmatprep.subr.mxu0 0.0
    %1277 = vmatpush2.msra.mxu0 0.0
    %1278 = vmatprep.subr.mxu0 0.0
    %1279 = vmatpush2.msra.mxu0 0.0
    %1280 = vmatprep.subr.mxu0 0.0
    %1281 = vmatpush2.msra.mxu0 0.0
    %1282 = vmatprep.subr.mxu0 0.0
    %1283 = vmatpush2.msra.mxu0 0.0
    %1284 = vmatprep.subr.mxu0 0.0
    %1285 = vmatpush2.msra.mxu0 0.0
    %1286 = vmatprep.subr.mxu0 0.0
    %1287 = vmatpush2.msra.mxu0 0.0
    %1288 = vmatprep.subr.mxu0 0.0
    %1289 = vmatpush2.msra.mxu0 0.0
    %1290 = vmatprep.mubr.f32.mxu0 0.0
    %1291 = vmatmul.mubr.f32.gmra.mxu0 %v1224
    %v1292 = vpop.f32.mrf.mxu0
    %v1293 = vadd.f32 0.0, %v1292
    %v1294 = vpop.f32.mrf.mxu0
    %1295 = vdwg.mxu0
    %v1296 = vld [vmem:[#allocation5 + $0x10] sm:$0xff]
    %v1297 = vld [vmem:[#allocation5 + $0x18] sm:$0xff]
    %1300 = vrot.lane.b32.xlu0 %v1296, 32
    %v1301 = vpop.permute.xlu0 %1300
    %1302 = vrot.lane.b32.xlu0 %v1297, 32
    %v1303 = vpop.permute.xlu0 %1302
    %v1307 = vsel %vm352, %v1220, 0
    %v1310 = vsel %vm352, %v1293, 0
    %1312 = vmatprep.subr.mxu0 0.0
    %1313 = vmatpush1.msra.mxu0 0.0
    %1314 = vmatprep.subr.mxu0 0.0
    %1315 = vmatpush1.msra.mxu0 0.0
    %1316 = vmatprep.subr.mxu0 0.0
    %1317 = vmatpush1.msra.mxu0 0.0
    %1318 = vmatprep.subr.mxu0 0.0
    %1319 = vmatpush1.msra.mxu0 0.0
    %1320 = vmatprep.subr.mxu0 0.0
    %1321 = vmatpush1.msra.mxu0 0.0
    %1322 = vmatprep.subr.mxu0 0.0
    %1323 = vmatpush1.msra.mxu0 0.0
    %1324 = vmatprep.subr.mxu0 0.0
    %1325 = vmatpush1.msra.mxu0 0.0
    %1326 = vmatprep.subr.mxu0 0.0
    %1327 = vmatpush1.msra.mxu0 0.0
    %1328 = vmatprep.subr.mxu0 0.0
    %1329 = vmatpush1.msra.mxu0 0.0
    %1330 = vmatprep.subr.mxu0 0.0
    %1331 = vmatpush1.msra.mxu0 0.0
    %1332 = vmatprep.subr.mxu0 0.0
    %1333 = vmatpush1.msra.mxu0 0.0
    %1334 = vmatprep.subr.mxu0 0.0
    %1335 = vmatpush1.msra.mxu0 0.0
    %1336 = vmatprep.subr.mxu0 0.0
    %1337 = vmatpush1.msra.mxu0 0.0
    %1338 = vmatprep.subr.mxu0 0.0
    %1339 = vmatpush1.msra.mxu0 0.0
    %1340 = vmatprep.subr.mxu0 0.0
    %1341 = vmatpush1.msra.mxu0 %v1303
    %1342 = vmatprep.subr.mxu0 0.0
    %1343 = vmatpush1.msra.mxu0 %v1301
    %1344 = vmatprep.subr.mxu0 0.0
    %1345 = vmatpush2.msra.mxu0 0.0
    %1346 = vmatprep.subr.mxu0 0.0
    %1347 = vmatpush2.msra.mxu0 0.0
    %1348 = vmatprep.subr.mxu0 0.0
    %1349 = vmatpush2.msra.mxu0 0.0
    %1350 = vmatprep.subr.mxu0 0.0
    %1351 = vmatpush2.msra.mxu0 0.0
    %1352 = vmatprep.subr.mxu0 0.0
    %1353 = vmatpush2.msra.mxu0 0.0
    %1354 = vmatprep.subr.mxu0 0.0
    %1355 = vmatpush2.msra.mxu0 0.0
    %1356 = vmatprep.subr.mxu0 0.0
    %1357 = vmatpush2.msra.mxu0 0.0
    %1358 = vmatprep.subr.mxu0 0.0
    %1359 = vmatpush2.msra.mxu0 0.0
    %1360 = vmatprep.subr.mxu0 0.0
    %1361 = vmatpush2.msra.mxu0 0.0
    %1362 = vmatprep.subr.mxu0 0.0
    %1363 = vmatpush2.msra.mxu0 0.0
    %1364 = vmatprep.subr.mxu0 0.0
    %1365 = vmatpush2.msra.mxu0 0.0
    %1366 = vmatprep.subr.mxu0 0.0
    %1367 = vmatpush2.msra.mxu0 0.0
    %1368 = vmatprep.subr.mxu0 0.0
    %1369 = vmatpush2.msra.mxu0 0.0
    %1370 = vmatprep.subr.mxu0 0.0
    %1371 = vmatpush2.msra.mxu0 0.0
    %1372 = vmatprep.subr.mxu0 0.0
    %1373 = vmatpush2.msra.mxu0 0.0
    %1374 = vmatprep.subr.mxu0 0.0
    %1375 = vmatpush2.msra.mxu0 0.0
    %1376 = vmatprep.mubr.f32.mxu0 0.0
    %1377 = vmatmul.mubr.f32.gmra.mxu0 %v1307
    %v1378 = vpop.f32.mrf.mxu0
    %v1379 = vadd.f32 0.0, %v1378
    %v1380 = vpop.f32.mrf.mxu0
    %1381 = vmatprep.mubr.f32.mxu0 0.0
    %1382 = vmatmul.mubr.f32.gmra.mxu0 %v1310
    %v1383 = vpop.f32.mrf.mxu0
    %v1384 = vadd.f32 0.0, %v1383
    %v1385 = vpop.f32.mrf.mxu0
    %1386 = vdwg.mxu0
    %1389 = vrot.lane.b32.xlu0 %v676, 32
    %v1390 = vpop.permute.xlu0 %1389
    %1391 = vrot.lane.b32.xlu0 %v677, 32
    %v1392 = vpop.permute.xlu0 %1391
    %v1396 = vsel %vm352, %v600, 0
    %v1399 = vsel %vm352, %v673, 0
    %1401 = vmatprep.subr.mxu0 0.0
    %1402 = vmatpush1.msra.mxu0 0.0
    %1403 = vmatprep.subr.mxu0 0.0
    %1404 = vmatpush1.msra.mxu0 0.0
    %1405 = vmatprep.subr.mxu0 0.0
    %1406 = vmatpush1.msra.mxu0 0.0
    %1407 = vmatprep.subr.mxu0 0.0
    %1408 = vmatpush1.msra.mxu0 0.0
    %1409 = vmatprep.subr.mxu0 0.0
    %1410 = vmatpush1.msra.mxu0 0.0
    %1411 = vmatprep.subr.mxu0 0.0
    %1412 = vmatpush1.msra.mxu0 0.0
    %1413 = vmatprep.subr.mxu0 0.0
    %1414 = vmatpush1.msra.mxu0 0.0
    %1415 = vmatprep.subr.mxu0 0.0
    %1416 = vmatpush1.msra.mxu0 0.0
    %1417 = vmatprep.subr.mxu0 0.0
    %1418 = vmatpush1.msra.mxu0 0.0
    %1419 = vmatprep.subr.mxu0 0.0
    %1420 = vmatpush1.msra.mxu0 0.0
    %1421 = vmatprep.subr.mxu0 0.0
    %1422 = vmatpush1.msra.mxu0 0.0
    %1423 = vmatprep.subr.mxu0 0.0
    %1424 = vmatpush1.msra.mxu0 0.0
    %1425 = vmatprep.subr.mxu0 0.0
    %1426 = vmatpush1.msra.mxu0 0.0
    %1427 = vmatprep.subr.mxu0 0.0
    %1428 = vmatpush1.msra.mxu0 0.0
    %1429 = vmatprep.subr.mxu0 0.0
    %1430 = vmatpush1.msra.mxu0 %v1392
    %1431 = vmatprep.subr.mxu0 0.0
    %1432 = vmatpush1.msra.mxu0 %v1390
    %1433 = vmatprep.subr.mxu0 0.0
    %1434 = vmatpush2.msra.mxu0 0.0
    %1435 = vmatprep.subr.mxu0 0.0
    %1436 = vmatpush2.msra.mxu0 0.0
    %1437 = vmatprep.subr.mxu0 0.0
    %1438 = vmatpush2.msra.mxu0 0.0
    %1439 = vmatprep.subr.mxu0 0.0
    %1440 = vmatpush2.msra.mxu0 0.0
    %1441 = vmatprep.subr.mxu0 0.0
    %1442 = vmatpush2.msra.mxu0 0.0
    %1443 = vmatprep.subr.mxu0 0.0
    %1444 = vmatpush2.msra.mxu0 0.0
    %1445 = vmatprep.subr.mxu0 0.0
    %1446 = vmatpush2.msra.mxu0 0.0
    %1447 = vmatprep.subr.mxu0 0.0
    %1448 = vmatpush2.msra.mxu0 0.0
    %1449 = vmatprep.subr.mxu0 0.0
    %1450 = vmatpush2.msra.mxu0 0.0
    %1451 = vmatprep.subr.mxu0 0.0
    %1452 = vmatpush2.msra.mxu0 0.0
    %1453 = vmatprep.subr.mxu0 0.0
    %1454 = vmatpush2.msra.mxu0 0.0
    %1455 = vmatprep.subr.mxu0 0.0
    %1456 = vmatpush2.msra.mxu0 0.0
    %1457 = vmatprep.subr.mxu0 0.0
    %1458 = vmatpush2.msra.mxu0 0.0
    %1459 = vmatprep.subr.mxu0 0.0
    %1460 = vmatpush2.msra.mxu0 0.0
    %1461 = vmatprep.subr.mxu0 0.0
    %1462 = vmatpush2.msra.mxu0 0.0
    %1463 = vmatprep.subr.mxu0 0.0
    %1464 = vmatpush2.msra.mxu0 0.0
    %1465 = vmatprep.mubr.f32.mxu0 0.0
    %1466 = vmatmul.mubr.f32.gmra.mxu0 %v1396
    %v1467 = vpop.f32.mrf.mxu0
    %v1468 = vadd.f32 %v1379, %v1467
    %v1469 = vpop.f32.mrf.mxu0
    %1470 = vmatprep.mubr.f32.mxu0 0.0
    %1471 = vmatmul.mubr.f32.gmra.mxu0 %v1399
    %v1472 = vpop.f32.mrf.mxu0
    %v1473 = vadd.f32 %v1384, %v1472
    %v1474 = vpop.f32.mrf.mxu0
    %1475 = vdwg.mxu0
    %v1476 = vld [vmem:[#allocation8 + $0x3] sm:$0x1]
    %v1477 = vlaneseq
    %v1478 = vshrl.u32 %v1477, 7
    %v1479 = vsub.s32 0, %v1478
    %v1480 = vrot.slane %v1476, %v1479
    %v1481 = vadd.f32 %v1468, %v1480
    %v1482 = vadd.f32 %v1473, %v1480
    %v1483 = vld [vmem:[#allocation7] sm:$0xff]
    %v1484 = vld [vmem:[#allocation7 + $0x8] sm:$0xff]
    %v1485 = vld [vmem:[#allocation7 + $0x10] sm:$0xff]
    %v1486 = vld [vmem:[#allocation7 + $0x18] sm:$0xff]
    %v1487 = vld [vmem:[#allocation7 + $0x20] sm:$0xff]
    %v1488 = vld [vmem:[#allocation7 + $0x28] sm:$0xff]
    %v1489 = vld [vmem:[#allocation7 + $0x30] sm:$0xff]
    %v1490 = vld [vmem:[#allocation7 + $0x38] sm:$0xff]
    %1491 = vmatprep.subr.mxu0 0.0
    %1492 = vmatpush1.msra.mxu0 0.0
    %1493 = vmatprep.subr.mxu0 0.0
    %1494 = vmatpush1.msra.mxu0 0.0
    %1495 = vmatprep.subr.mxu0 0.0
    %1496 = vmatpush1.msra.mxu0 0.0
    %1497 = vmatprep.subr.mxu0 0.0
    %1498 = vmatpush1.msra.mxu0 0.0
    %1499 = vmatprep.subr.mxu0 0.0
    %1500 = vmatpush1.msra.mxu0 0.0
    %1501 = vmatprep.subr.mxu0 0.0
    %1502 = vmatpush1.msra.mxu0 0.0
    %1503 = vmatprep.subr.mxu0 0.0
    %1504 = vmatpush1.msra.mxu0 0.0
    %1505 = vmatprep.subr.mxu0 0.0
    %1506 = vmatpush1.msra.mxu0 0.0
    %1507 = vmatprep.subr.mxu0 0.0
    %1508 = vmatpush1.msra.mxu0 0.0
    %1509 = vmatprep.subr.mxu0 0.0
    %1510 = vmatpush1.msra.mxu0 0.0
    %1511 = vmatprep.subr.mxu0 0.0
    %1512 = vmatpush1.msra.mxu0 0.0
    %1513 = vmatprep.subr.mxu0 0.0
    %1514 = vmatpush1.msra.mxu0 0.0
    %1515 = vmatprep.subr.mxu0 0.0
    %1516 = vmatpush1.msra.mxu0 %v1490
    %1517 = vmatprep.subr.mxu0 0.0
    %1518 = vmatpush1.msra.mxu0 %v1489
    %1519 = vmatprep.subr.mxu0 0.0
    %1520 = vmatpush1.msra.mxu0 %v1488
    %1521 = vmatprep.subr.mxu0 0.0
    %1522 = vmatpush1.msra.mxu0 %v1487
    %1523 = vmatprep.subr.mxu0 0.0
    %1524 = vmatpush2.msra.mxu0 0.0
    %1525 = vmatprep.subr.mxu0 0.0
    %1526 = vmatpush2.msra.mxu0 0.0
    %1527 = vmatprep.subr.mxu0 0.0
    %1528 = vmatpush2.msra.mxu0 0.0
    %1529 = vmatprep.subr.mxu0 0.0
    %1530 = vmatpush2.msra.mxu0 0.0
    %1531 = vmatprep.subr.mxu0 0.0
    %1532 = vmatpush2.msra.mxu0 0.0
    %1533 = vmatprep.subr.mxu0 0.0
    %1534 = vmatpush2.msra.mxu0 0.0
    %1535 = vmatprep.subr.mxu0 0.0
    %1536 = vmatpush2.msra.mxu0 0.0
    %1537 = vmatprep.subr.mxu0 0.0
    %1538 = vmatpush2.msra.mxu0 0.0
    %1539 = vmatprep.subr.mxu0 0.0
    %1540 = vmatpush2.msra.mxu0 0.0
    %1541 = vmatprep.subr.mxu0 0.0
    %1542 = vmatpush2.msra.mxu0 0.0
    %1543 = vmatprep.subr.mxu0 0.0
    %1544 = vmatpush2.msra.mxu0 0.0
    %1545 = vmatprep.subr.mxu0 0.0
    %1546 = vmatpush2.msra.mxu0 0.0
    %1547 = vmatprep.subr.mxu0 0.0
    %1548 = vmatpush2.msra.mxu0 0.0
    %1549 = vmatprep.subr.mxu0 0.0
    %1550 = vmatpush2.msra.mxu0 0.0
    %1551 = vmatprep.subr.mxu0 0.0
    %1552 = vmatpush2.msra.mxu0 0.0
    %1553 = vmatprep.subr.mxu0 0.0
    %1554 = vmatpush2.msra.mxu0 0.0
    %1555 = vmatprep.mubr.f32.mxu0 0.0
    %1556 = vmatmul.mubr.f32.gmra.mxu0 %v84
    %v1557 = vpop.f32.mrf.mxu0
    %v1558 = vadd.f32 0.0, %v1557
    %v1559 = vpop.f32.mrf.mxu0
    %1560 = vmatprep.mubr.f32.mxu0 0.0
    %1561 = vmatmul.mubr.f32.gmra.mxu0 %v87
    %v1562 = vpop.f32.mrf.mxu0
    %v1563 = vadd.f32 0.0, %v1562
    %v1564 = vpop.f32.mrf.mxu0
    %1565 = vdwg.mxu0
    %v1567 = vsel %vm82, %v1481, 0
    %v1570 = vsel %vm82, %v1482, 0
    %1572 = vmatprep.subr.mxu0 0.0
    %1573 = vmatpush1.msra.mxu0 0.0
    %1574 = vmatprep.subr.mxu0 0.0
    %1575 = vmatpush1.msra.mxu0 0.0
    %1576 = vmatprep.subr.mxu0 0.0
    %1577 = vmatpush1.msra.mxu0 0.0
    %1578 = vmatprep.subr.mxu0 0.0
    %1579 = vmatpush1.msra.mxu0 0.0
    %1580 = vmatprep.subr.mxu0 0.0
    %1581 = vmatpush1.msra.mxu0 0.0
    %1582 = vmatprep.subr.mxu0 0.0
    %1583 = vmatpush1.msra.mxu0 0.0
    %1584 = vmatprep.subr.mxu0 0.0
    %1585 = vmatpush1.msra.mxu0 0.0
    %1586 = vmatprep.subr.mxu0 0.0
    %1587 = vmatpush1.msra.mxu0 0.0
    %1588 = vmatprep.subr.mxu0 0.0
    %1589 = vmatpush1.msra.mxu0 0.0
    %1590 = vmatprep.subr.mxu0 0.0
    %1591 = vmatpush1.msra.mxu0 0.0
    %1592 = vmatprep.subr.mxu0 0.0
    %1593 = vmatpush1.msra.mxu0 0.0
    %1594 = vmatprep.subr.mxu0 0.0
    %1595 = vmatpush1.msra.mxu0 0.0
    %1596 = vmatprep.subr.mxu0 0.0
    %1597 = vmatpush1.msra.mxu0 %v1486
    %1598 = vmatprep.subr.mxu0 0.0
    %1599 = vmatpush1.msra.mxu0 %v1485
    %1600 = vmatprep.subr.mxu0 0.0
    %1601 = vmatpush1.msra.mxu0 %v1484
    %1602 = vmatprep.subr.mxu0 0.0
    %1603 = vmatpush1.msra.mxu0 %v1483
    %1604 = vmatprep.subr.mxu0 0.0
    %1605 = vmatpush2.msra.mxu0 0.0
    %1606 = vmatprep.subr.mxu0 0.0
    %1607 = vmatpush2.msra.mxu0 0.0
    %1608 = vmatprep.subr.mxu0 0.0
    %1609 = vmatpush2.msra.mxu0 0.0
    %1610 = vmatprep.subr.mxu0 0.0
    %1611 = vmatpush2.msra.mxu0 0.0
    %1612 = vmatprep.subr.mxu0 0.0
    %1613 = vmatpush2.msra.mxu0 0.0
    %1614 = vmatprep.subr.mxu0 0.0
    %1615 = vmatpush2.msra.mxu0 0.0
    %1616 = vmatprep.subr.mxu0 0.0
    %1617 = vmatpush2.msra.mxu0 0.0
    %1618 = vmatprep.subr.mxu0 0.0
    %1619 = vmatpush2.msra.mxu0 0.0
    %1620 = vmatprep.subr.mxu0 0.0
    %1621 = vmatpush2.msra.mxu0 0.0
    %1622 = vmatprep.subr.mxu0 0.0
    %1623 = vmatpush2.msra.mxu0 0.0
    %1624 = vmatprep.subr.mxu0 0.0
    %1625 = vmatpush2.msra.mxu0 0.0
    %1626 = vmatprep.subr.mxu0 0.0
    %1627 = vmatpush2.msra.mxu0 0.0
    %1628 = vmatprep.subr.mxu0 0.0
    %1629 = vmatpush2.msra.mxu0 0.0
    %1630 = vmatprep.subr.mxu0 0.0
    %1631 = vmatpush2.msra.mxu0 0.0
    %1632 = vmatprep.subr.mxu0 0.0
    %1633 = vmatpush2.msra.mxu0 0.0
    %1634 = vmatprep.subr.mxu0 0.0
    %1635 = vmatpush2.msra.mxu0 0.0
    %1636 = vmatprep.mubr.f32.mxu0 0.0
    %1637 = vmatmul.mubr.f32.gmra.mxu0 %v1567
    %v1638 = vpop.f32.mrf.mxu0
    %v1639 = vadd.f32 %v1558, %v1638
    %v1640 = vpop.f32.mrf.mxu0
    %1641 = vmatprep.mubr.f32.mxu0 0.0
    %1642 = vmatmul.mubr.f32.gmra.mxu0 %v1570
    %v1643 = vpop.f32.mrf.mxu0
    %v1644 = vadd.f32 %v1563, %v1643
    %v1645 = vpop.f32.mrf.mxu0
    %1646 = vdwg.mxu0
    %v1647 = vld [vmem:[#allocation8 + $0x4] sm:$0x1]
    %v1648 = vlaneseq
    %v1649 = vshrl.u32 %v1648, 7
    %v1650 = vsub.s32 0, %v1649
    %v1651 = vrot.slane %v1647, %v1650
    %v1652 = vadd.f32 %v1639, %v1651
    %v1653 = vadd.f32 %v1644, %v1651
    %v1654 = vmax.f32 %v1652, 0.0
    %v1655 = vmax.f32 %v1653, 0.0
    %v1656 = vld [vmem:[#allocation7] sm:$0xff]
    %v1657 = vld [vmem:[#allocation7 + $0x8] sm:$0xff]
    %v1658 = vld [vmem:[#allocation7 + $0x10] sm:$0xff]
    %v1659 = vld [vmem:[#allocation7 + $0x18] sm:$0xff]
    %v1660 = vld [vmem:[#allocation8 + $0x5] sm:$0x1]
    %v1661 = vlaneseq
    %v1662 = vshrl.u32 %v1661, 7
    %v1663 = vsub.s32 0, %v1662
    %v1664 = vrot.slane %v1660, %v1663
    %1673 = vrot.lane.b32.xlu0 %v1656, 64
    %v1674 = vpop.permute.xlu0 %1673
    %1675 = vrot.lane.b32.xlu0 %v1657, 64
    %v1676 = vpop.permute.xlu0 %1675
    %1677 = vrot.lane.b32.xlu0 %v1658, 64
    %v1678 = vpop.permute.xlu0 %1677
    %1679 = vrot.lane.b32.xlu0 %v1659, 64
    %v1680 = vpop.permute.xlu0 %1679
    %1681 = vrot.lane.b32.xlu0 %v1487, 64
    %v1682 = vpop.permute.xlu0 %1681
    %1683 = vrot.lane.b32.xlu0 %v1488, 64
    %v1684 = vpop.permute.xlu0 %1683
    %1685 = vrot.lane.b32.xlu0 %v1489, 64
    %v1686 = vpop.permute.xlu0 %1685
    %1687 = vrot.lane.b32.xlu0 %v1490, 64
    %v1688 = vpop.permute.xlu0 %1687
    %vm1697 = vcmask 523264
    %v1699 = vsel %vm1697, %v1654, 0
    %v1702 = vsel %vm1697, %v1655, 0
    %1704 = vmatprep.subr.mxu0 0.0
    %1705 = vmatpush1.msra.mxu0 0.0
    %1706 = vmatprep.subr.mxu0 0.0
    %1707 = vmatpush1.msra.mxu0 0.0
    %1708 = vmatprep.subr.mxu0 0.0
    %1709 = vmatpush1.msra.mxu0 0.0
    %1710 = vmatprep.subr.mxu0 0.0
    %1711 = vmatpush1.msra.mxu0 0.0
    %1712 = vmatprep.subr.mxu0 0.0
    %1713 = vmatpush1.msra.mxu0 0.0
    %1714 = vmatprep.subr.mxu0 0.0
    %1715 = vmatpush1.msra.mxu0 0.0
    %1716 = vmatprep.subr.mxu0 0.0
    %1717 = vmatpush1.msra.mxu0 0.0
    %1718 = vmatprep.subr.mxu0 0.0
    %1719 = vmatpush1.msra.mxu0 0.0
    %1720 = vmatprep.subr.mxu0 0.0
    %1721 = vmatpush1.msra.mxu0 %v1688
    %1722 = vmatprep.subr.mxu0 0.0
    %1723 = vmatpush1.msra.mxu0 %v1686
    %1724 = vmatprep.subr.mxu0 0.0
    %1725 = vmatpush1.msra.mxu0 %v1684
    %1726 = vmatprep.subr.mxu0 0.0
    %1727 = vmatpush1.msra.mxu0 %v1682
    %1728 = vmatprep.subr.mxu0 0.0
    %1729 = vmatpush1.msra.mxu0 %v1680
    %1730 = vmatprep.subr.mxu0 0.0
    %1731 = vmatpush1.msra.mxu0 %v1678
    %1732 = vmatprep.subr.mxu0 0.0
    %1733 = vmatpush1.msra.mxu0 %v1676
    %1734 = vmatprep.subr.mxu0 0.0
    %1735 = vmatpush1.msra.mxu0 %v1674
    %1736 = vmatprep.subr.mxu0 0.0
    %1737 = vmatpush2.msra.mxu0 0.0
    %1738 = vmatprep.subr.mxu0 0.0
    %1739 = vmatpush2.msra.mxu0 0.0
    %1740 = vmatprep.subr.mxu0 0.0
    %1741 = vmatpush2.msra.mxu0 0.0
    %1742 = vmatprep.subr.mxu0 0.0
    %1743 = vmatpush2.msra.mxu0 0.0
    %1744 = vmatprep.subr.mxu0 0.0
    %1745 = vmatpush2.msra.mxu0 0.0
    %1746 = vmatprep.subr.mxu0 0.0
    %1747 = vmatpush2.msra.mxu0 0.0
    %1748 = vmatprep.subr.mxu0 0.0
    %1749 = vmatpush2.msra.mxu0 0.0
    %1750 = vmatprep.subr.mxu0 0.0
    %1751 = vmatpush2.msra.mxu0 0.0
    %1752 = vmatprep.subr.mxu0 0.0
    %1753 = vmatpush2.msra.mxu0 0.0
    %1754 = vmatprep.subr.mxu0 0.0
    %1755 = vmatpush2.msra.mxu0 0.0
    %1756 = vmatprep.subr.mxu0 0.0
    %1757 = vmatpush2.msra.mxu0 0.0
    %1758 = vmatprep.subr.mxu0 0.0
    %1759 = vmatpush2.msra.mxu0 0.0
    %1760 = vmatprep.subr.mxu0 0.0
    %1761 = vmatpush2.msra.mxu0 0.0
    %1762 = vmatprep.subr.mxu0 0.0
    %1763 = vmatpush2.msra.mxu0 0.0
    %1764 = vmatprep.subr.mxu0 0.0
    %1765 = vmatpush2.msra.mxu0 0.0
    %1766 = vmatprep.subr.mxu0 0.0
    %1767 = vmatpush2.msra.mxu0 0.0
    %1768 = vmatprep.mubr.f32.mxu0 0.0
    %1769 = vmatmul.mubr.f32.gmra.mxu0 %v1699
    %v1770 = vpop.f32.mrf.mxu0
    %v1771 = vadd.f32 %v1664, %v1770
    %v1772 = vpop.f32.mrf.mxu0
    %1773 = vmatprep.mubr.f32.mxu0 0.0
    %1774 = vmatmul.mubr.f32.gmra.mxu0 %v1702
    %v1775 = vpop.f32.mrf.mxu0
    %v1776 = vadd.f32 %v1664, %v1775
    %v1777 = vpop.f32.mrf.mxu0
    %1778 = vdwg.mxu0
    %v1779 = vmax.f32 %v1771, 0.0
    %v1780 = vmax.f32 %v1776, 0.0
    %v1781 = vld [vmem:[#allocation8 + $0x6] sm:$0x1]
    %v1782 = vlaneseq
    %v1783 = vshrl.u32 %v1782, 7
    %v1784 = vsub.s32 0, %v1783
    %v1785 = vrot.slane %v1781, %v1784
    %v1786 = vmul.f32 %v1779, %v1785
    %v1787 = vmul.f32 %v1780, %v1785
    %v1788 = vsel %vm82, %v1786, 0.0
    %1789 = vadd.xlane.f32.xlu0 %v1788
    %v1790 = vpop.xlane.xlu0 %1789
    %v1791 = vsel %vm82, %v1787, 0.0
    %1792 = vadd.xlane.f32.xlu0 %v1791
    %v1793 = vpop.xlane.xlu0 %1792
    %v1794 = vld [vmem:[#allocation8 + $0x7] sm:$0x1]
    %s1796 = vtos %v1794
    %v1797 = vstv %s1796
    %v1799 = vadd.f32 %v1790, %v1797
    %v1800 = vadd.f32 %v1793, %v1797
    %v1801 = vxor.u32 %v1799, 2147483648
    %v1802 = vxor.u32 %v1800, 2147483648
    %v1803 = vmul.f32 %v1801, 1.442695
    %v1804 = vpow.pop %v1803
    %v1805 = vmul.f32 %v1802, 1.442695
    %v1806 = vpow.pop %v1805
    %v1807 = vadd.f32 %v1804, 1.0
    %v1808 = vadd.f32 %v1806, 1.0
    %v1809 = vrcp.pop %v1807
    %v1810 = vmul.f32 1.0, %v1809
    %v1811 = vrcp.pop %v1808
    %v1812 = vmul.f32 1.0, %v1811
    %v1815 = vlaneseq
    %v1816 = vand.u32 %v1815, 127
    %v1817 = vlaneseq
    %v1818 = vshrl.u32 %v1817, 7
    %v1819 = vsub.s32 %v1816, %v1818
    %v1820 = vrot.slane %v1810, %v1819
    %v1821 = vlaneseq
    %v1822 = vshrl.u32 %v1821, 7
    %v1823 = vsub.s32 %v1816, %v1822
    %v1824 = vrot.slane %v1812, %v1823
    %vm1825 = vcmask 1041409
    %v1826 = vsel %vm1825, %v1824, %v1820
    %vm1828 = vcmask 58368
    %1829 = vst.msk [vmem:[#allocation10] sm:$0x3] %vm1828, %v1826
    // Predicated region
    $region34: #{tpu_custom_call.1} parent=1 // pred_check
      _
    $region35: #{tpu_custom_call.1} parent=1 // pred_check_branch
      %1831 = sbr.rel (0) target = $region37
    $region36: #{tpu_custom_call.1} parent=1 // pred_region
      %s1833 = ssub.s32 32, 32
      %1834 = vsyncadd [#allocation4], %s1833
      %s1836 = sshll.u32 [#allocation10], 4
      %s1837 = int_to_ptr.vmem [resolvable:$true] %s1836
      %1839 = dma.vmem_to_hbm [thread:$0]  %s1837, 32, %s4, [#allocation4]
    $region37: #{tpu_custom_call.1} parent=1 // pred_fallthru
      _
    // Predicated region
    $region38: #{tpu_custom_call.1} parent=1 // pred_check
      _
    $region39: #{tpu_custom_call.1} parent=1 // pred_check_branch
      %1841 = sbr.rel (0) target = $region41
    $region40: #{tpu_custom_call.1} parent=1 // pred_region
      %1842 = dma.done [#allocation4], 32
    $region41: #{tpu_custom_call.1} parent=1 // pred_fallthru
      _
    %1843 = vsyncpa [#allocation3], 1
    %1844 = vsyncpa [#allocation6], 1
    %1845 = vsyncpa [#allocation9], 1
    %1846 = vsyncpa [#allocation4], 1

</llo_original>
